<compile_context>
chip_gen: v6e
topology: v6e:2x2x1
jax: 0.10.0
libtpu: 0.0.40
codegen_flags: <defaults>
</compile_context>

<pallas_src>
import math
import functools

import jax
import jax.numpy as jnp
from jax.experimental import pallas as pl
from jax.experimental.pallas import tpu as pltpu


def _round_up(n: int, m: int) -> int:
    return ((n + m - 1) // m) * m


# ---------------------------------------------------------------------------
# Kernels. Grid = (nn, nb): j = gate-output (N) tile (outer, weights reused),
#                           i = batch tile (inner).
#   x_ref  : [TM, In_p]   compute dtype (first layer only)
#   h_ref  : [TM, Hp]     float32 (full hidden: contraction + f32 epilogue slice)
#   wx_ref : [3, In_p, TN] gate-major input weights (first layer only)
#   rh_ref : [3, Hp,  TN] gate-major recurrent weights
#   b_ref  : [3, 1,   TN] fused gate biases (f32)
#   out_ref: [TM, TN]
# Gate order 0/1/2 = (H, C, T)  ->  (hl, tl, cl), matching the module's T/C swap.
# ---------------------------------------------------------------------------
def _highway_kernel_first(x_ref, h_ref, wx_ref, rh_ref, b_ref, out_ref,
                          *, tn, hp, compute_dtype):
    j = pl.program_id(0)
    x = x_ref[...]
    h32 = h_ref[...]
    hc = h32.astype(compute_dtype)

    def gate(g):
        acc = jnp.dot(x, wx_ref[g], preferred_element_type=jnp.float32)
        acc = acc + jnp.dot(hc, rh_ref[g], preferred_element_type=jnp.float32)
        return acc + b_ref[g]

    hl = gate(0)   # W_H / R_H
    tl = gate(1)   # W_C / R_C   (intentional swap)
    cl = gate(2)   # W_T / R_T   (intentional swap)

    if tn == hp:
        h_col = h32
    else:
        h_col = h_ref[:, pl.ds(pl.multiple_of(j * tn, 128), tn)]
    out_ref[...] = (hl * tl + h_col * cl).astype(out_ref.dtype)


def _highway_kernel_rec(h_ref, rh_ref, b_ref, out_ref, *, tn, hp, compute_dtype):
    j = pl.program_id(0)
    h32 = h_ref[...]
    hc = h32.astype(compute_dtype)

    def gate(g):
        return jnp.dot(hc, rh_ref[g], preferred_element_type=jnp.float32) + b_ref[g]

    hl = gate(0)
    tl = gate(1)
    cl = gate(2)

    if tn == hp:
        h_col = h32
    else:
        h_col = h_ref[:, pl.ds(pl.multiple_of(j * tn, 128), tn)]
    out_ref[...] = (hl * tl + h_col * cl).astype(out_ref.dtype)


# ---------------------------------------------------------------------------
# One-time (per layer) parameter fusion: pad to 128 lanes, stack gate-major,
# cast weights to the MXU compute dtype, pre-sum W/R biases. Call once, reuse.
# ---------------------------------------------------------------------------
def fuse_highway_params(params, input_size, hidden_size, first_layer,
                        compute_dtype=jnp.bfloat16):
    H = hidden_size
    Hp = _round_up(H, 128)

    def pad_w(w, rows_p):
        return jnp.pad(w, ((0, rows_p - w.shape[0]), (0, Hp - w.shape[1])))

    def pad_b(b):
        return jnp.pad(b, ((0, 0), (0, Hp - b.shape[1])))

    fused = {}
    if first_layer:
        In_p = _round_up(input_size, 128)
        fused["Wx"] = jnp.stack([pad_w(params["W_H"][0], In_p),
                                 pad_w(params["W_C"][0], In_p),
                                 pad_w(params["W_T"][0], In_p)],
                                axis=0).astype(compute_dtype)
        b = jnp.stack([pad_b(params["W_H"][1] + params["R_H"][1]),
                       pad_b(params["W_C"][1] + params["R_C"][1]),
                       pad_b(params["W_T"][1] + params["R_T"][1])], axis=0)
    else:
        In_p = 0
        b = jnp.stack([pad_b(params["R_H"][1]),
                       pad_b(params["R_C"][1]),
                       pad_b(params["R_T"][1])], axis=0)

    fused["Rh"] = jnp.stack([pad_w(params["R_H"][0], Hp),
                             pad_w(params["R_C"][0], Hp),
                             pad_w(params["R_T"][0], Hp)],
                            axis=0).astype(compute_dtype)
    fused["b"] = b.astype(jnp.float32)          # [3, 1, Hp]

    meta = dict(input_size=input_size, hidden_size=H, Hp=Hp, In_p=In_p,
                first_layer=first_layer, compute_dtype=compute_dtype)
    return fused, meta


def _pick_tn(Hp, k_rows, itemsize, budget_bytes):
    """Largest N tile (multiple of 128, divides Hp) whose resident weight slice
    (3 gates x k_rows x TN, worst-case double-buffered) fits the VMEM budget."""
    m = Hp // 128
    for d in range(m, 0, -1):
        if m % d:
            continue
        cand = 128 * d
        if 2 * 3 * k_rows * cand * itemsize <= budget_bytes:
            return cand
    return 128


# ---------------------------------------------------------------------------
# Public forward pass (expects pre-fused params).
# ---------------------------------------------------------------------------
def highway_block(fused, meta, _input, prev_hidden, *, block_batch=512, tn=None,
                  weight_budget_bytes=48 << 20):
    first_layer = meta["first_layer"]
    H, Hp, In_p = meta["hidden_size"], meta["Hp"], meta["In_p"]
    cdt = meta["compute_dtype"]
    B = prev_hidden.shape[0]
    out_dtype = prev_hidden.dtype

    itm_c = jnp.dtype(cdt).itemsize
    itm_o = jnp.dtype(out_dtype).itemsize

    # Batch tile: multiple of the sublane pack factor of the narrowest dtype used.
    min_item = min(itm_c, itm_o, 4)
    sub = 8 if min_item >= 4 else (16 if min_item == 2 else 32)
    TM = _round_up(min(block_batch, _round_up(B, sub)), sub)
    B_pad = _round_up(B, TM)

    # Gate-output (N) tiling so resident weights fit v7x's per-TC VMEM.
    k_rows = (In_p if first_layer else 0) + Hp
    if tn is None:
        tn = _pick_tn(Hp, k_rows, itm_c, weight_budget_bytes)
    assert Hp % tn == 0 and tn % 128 == 0
    nn = Hp // tn
    nb = B_pad // TM

    # Activations: h stays f32 (exact epilogue), x cast to compute dtype.
    h_p = jnp.pad(prev_hidden.astype(jnp.float32), ((0, B_pad - B), (0, Hp - H)))
    args = []
    if first_layer:
        x_p = jnp.pad(_input,
                      ((0, B_pad - B), (0, In_p - _input.shape[1]))).astype(cdt)
        args.append(x_p)
    args.append(h_p)
    if first_layer:
        args.append(fused["Wx"])
    args.append(fused["Rh"])
    args.append(fused["b"])

    # Explicit VMEM limit sized from the actual buffers (+ generous margin).
    need = 2 * TM * Hp * 4 + 2 * TM * tn * itm_o + 2 * 3 * tn * 4
    need += 2 * 3 * Hp * tn * itm_c
    if first_layer:
        need += 2 * TM * In_p * itm_c + 2 * 3 * In_p * tn * itm_c
    need += 4 * TM * tn * 4                       # gate intermediates / scratch headroom
    vmem_limit = int(min(max(2 * need + (8 << 20), 32 << 20), 100 << 20))

    if first_layer:
        kernel = functools.partial(_highway_kernel_first, tn=tn, hp=Hp, compute_dtype=cdt)
    else:
        kernel = functools.partial(_highway_kernel_rec, tn=tn, hp=Hp, compute_dtype=cdt)

    def build(single_buffer_weights):
        def wspec(shape, imap):
            if single_buffer_weights:
                return pl.BlockSpec(shape, imap, pipeline_mode=pl.Buffered(1))
            return pl.BlockSpec(shape, imap)

        in_specs = []
        if first_layer:
            in_specs.append(pl.BlockSpec((TM, In_p), lambda j, i: (i, 0)))    # x
        in_specs.append(pl.BlockSpec((TM, Hp), lambda j, i: (i, 0)))          # h (f32)
        if first_layer:
            in_specs.append(wspec((3, In_p, tn), lambda j, i: (0, 0, j)))     # Wx
        in_specs.append(wspec((3, Hp, tn), lambda j, i: (0, 0, j)))           # Rh
        in_specs.append(wspec((3, 1, tn), lambda j, i: (0, 0, j)))            # bias

        return pl.pallas_call(
            kernel,
            out_shape=jax.ShapeDtypeStruct((B_pad, Hp), out_dtype),
            grid=(nn, nb),                     # N outer (weights reused), batch inner
            in_specs=in_specs,
            out_specs=pl.BlockSpec((TM, tn), lambda j, i: (i, j)),
            compiler_params=pltpu.CompilerParams(
                dimension_semantics=("parallel", "parallel"),
                vmem_limit_bytes=vmem_limit),
        )

    try:
        out = build(nn == 1)(*args)            # single-buffer weights when index is constant
    except Exception:
        out = build(False)(*args)              # fallback: default double buffering

    return out[:B, :H]


# ---------------------------------------------------------------------------
# Parameter init (deterministic, mimics nn.Linear default uniform init).
# PyTorch weight is (out, in); stored transposed (in, out) for x @ W.
# ---------------------------------------------------------------------------
def _linear_params(key, in_features, out_features, dtype=jnp.float32):
    kw, kb = jax.random.split(key)
    bound = 1.0 / math.sqrt(in_features)
    w = jax.random.uniform(kw, (in_features, out_features), dtype,
                           minval=-bound, maxval=bound)
    b = jax.random.uniform(kb, (1, out_features), dtype,
                           minval=-bound, maxval=bound)
    return w, b


def init_highway_params(key, input_size, hidden_size, first_layer):
    names = (["W_H", "W_T", "W_C"] if first_layer else []) + ["R_H", "R_T", "R_C"]
    keys = jax.random.split(key, len(names))
    params = {}
    for name, k in zip(names, keys):
        fan_in = input_size if name.startswith("W") else hidden_size
        params[name] = _linear_params(k, fan_in, hidden_size)
    return params


# Pure-JAX reference for correctness checks.
def highway_block_ref(params, x, h, *, first_layer):
    def lin(p, v):
        w, bb = p
        return v @ w + bb
    if first_layer:
        hl = lin(params["W_H"], x) + lin(params["R_H"], h)
        tl = lin(params["W_C"], x) + lin(params["R_C"], h)
        cl = lin(params["W_T"], x) + lin(params["R_T"], h)
    else:
        hl = lin(params["R_H"], h)
        tl = lin(params["R_C"], h)
        cl = lin(params["R_T"], h)
    return hl * tl + h * cl


# ---------------------------------------------------------------------------
if __name__ == "__main__":
    key = jax.random.PRNGKey(0)
    keys = jax.random.split(key, 8)

    batch, input_size, hidden_size = 8, 16, 32
    x = jax.random.normal(keys[2], (batch, input_size), jnp.float32)
    h = jax.random.normal(keys[3], (batch, hidden_size), jnp.float32)

    # 1) first_layer=True, f32 compute path (exact semantics check)
    p1 = init_highway_params(keys[0], input_size, hidden_size, first_layer=True)
    f1, m1 = fuse_highway_params(p1, input_size, hidden_size, True,
                                 compute_dtype=jnp.float32)
    out1 = jax.block_until_ready(highway_block(f1, m1, x, h))
    ref1 = highway_block_ref(p1, x, h, first_layer=True)
    assert out1.shape == ref1.shape
    assert jnp.allclose(out1, ref1, atol=5e-5, rtol=5e-5), "first_layer (f32) mismatch"

    # 2) first_layer=False (recurrent-only path), f32 compute
    p2 = init_highway_params(keys[1], input_size, hidden_size, first_layer=False)
    f2, m2 = fuse_highway_params(p2, input_size, hidden_size, False,
                                 compute_dtype=jnp.float32)
    out2 = jax.block_until_ready(highway_block(f2, m2, x, h))
    ref2 = highway_block_ref(p2, x, h, first_layer=False)
    assert jnp.allclose(out2, ref2, atol=5e-5, rtol=5e-5), "non-first-layer (f32) mismatch"

    # 3) first_layer=True, default bf16 MXU path, multi-tile batch grid (nb=3)
    batch3 = 40
    x3 = jax.random.normal(keys[4], (batch3, input_size), jnp.float32)
    h3 = jax.random.normal(keys[5], (batch3, hidden_size), jnp.float32)
    f3, m3 = fuse_highway_params(p1, input_size, hidden_size, True)   # bf16 default
    out3 = jax.block_until_ready(highway_block(f3, m3, x3, h3, block_batch=16))
    ref3 = highway_block_ref(p1, x3, h3, first_layer=True)
    assert out3.shape == ref3.shape
    assert jnp.allclose(out3, ref3, atol=0.25, rtol=0.05), "bf16 path mismatch"

    # 4) first_layer=True, bf16, forced N-tiling (tn=128 < Hp=256 -> grid=(2,1))
    batch4, in4, hid4 = 16, 64, 256
    p4 = init_highway_params(keys[6], in4, hid4, first_layer=True)
    x4 = jax.random.normal(keys[7], (batch4, in4), jnp.float32)
    h4 = jax.random.normal(keys[3], (batch4, hid4), jnp.float32)
    f4, m4 = fuse_highway_params(p4, in4, hid4, True)                 # bf16 default
    out4 = jax.block_until_ready(highway_block(f4, m4, x4, h4, tn=128))
    ref4 = highway_block_ref(p4, x4, h4, first_layer=True)
    assert out4.shape == ref4.shape
    assert jnp.allclose(out4, ref4, atol=0.25, rtol=0.05), "N-tiled bf16 path mismatch"

    print("KERNEL_OK")
</pallas_src>

<mosaic_0001>
module attributes {stable_mosaic.version = 11 : i64} {
  func.func @_highway_kernel_first(%arg0: i32, %arg1: i32, %arg2: memref<8x128xf32, #tpu.memory_space<vmem>>, %arg3: memref<8x128xf32, #tpu.memory_space<vmem>>, %arg4: memref<3x128x128xf32, #tpu.memory_space<vmem>>, %arg5: memref<3x128x128xf32, #tpu.memory_space<vmem>>, %arg6: memref<3x1x128xf32, #tpu.memory_space<vmem>>, %arg7: memref<8x128xf32, #tpu.memory_space<vmem>>) attributes {dimension_semantics = [#tpu.dimension_semantics<parallel>, #tpu.dimension_semantics<parallel>], iteration_bounds = array<i64: 1, 1>, scalar_prefetch = 0 : i64, scratch_operands = 0 : i64, tpu.core_type = #tpu.core_type<tc>, window_params = [{transform_indices = @transform_0, window_bounds = array<i64: 8, 128>}, {transform_indices = @transform_1, window_bounds = array<i64: 8, 128>}, {pipeline_mode = #tpu.pipeline_mode<synchronous>, transform_indices = @transform_2, window_bounds = array<i64: 3, 128, 128>}, {pipeline_mode = #tpu.pipeline_mode<synchronous>, transform_indices = @transform_3, window_bounds = array<i64: 3, 128, 128>}, {pipeline_mode = #tpu.pipeline_mode<synchronous>, transform_indices = @transform_4, window_bounds = array<i64: 3, 1, 128>}, {transform_indices = @transform_5, window_bounds = array<i64: 8, 128>}]} {
    %c0 = arith.constant 0 : index
    %c0_0 = arith.constant 0 : index
    %0 = vector.load %arg2[%c0, %c0_0] : memref<8x128xf32, #tpu.memory_space<vmem>>, vector<8x128xf32>
    %c0_1 = arith.constant 0 : index
    %c0_2 = arith.constant 0 : index
    %1 = vector.load %arg3[%c0_1, %c0_2] : memref<8x128xf32, #tpu.memory_space<vmem>>, vector<8x128xf32>
    %c0_3 = arith.constant 0 : index
    %c0_4 = arith.constant 0 : index
    %c0_5 = arith.constant 0 : index
    %2 = vector.load %arg4[%c0_3, %c0_4, %c0_5] : memref<3x128x128xf32, #tpu.memory_space<vmem>>, vector<1x128x128xf32>
    %3 = vector.shape_cast %2 : vector<1x128x128xf32> to vector<128x128xf32>
    %cst = arith.constant dense<0.000000e+00> : vector<8x128xf32>
    %4 = tpu.matmul %0, %3, %cst {dimension_numbers = #tpu.dot_dimension_numbers<[1], [0], [0], [1], [0, 0, 1, 1], [], []>} : vector<8x128xf32>, vector<128x128xf32>, vector<8x128xf32> -> vector<8x128xf32>
    %c0_6 = arith.constant 0 : index
    %c0_7 = arith.constant 0 : index
    %c0_8 = arith.constant 0 : index
    %5 = vector.load %arg5[%c0_6, %c0_7, %c0_8] : memref<3x128x128xf32, #tpu.memory_space<vmem>>, vector<1x128x128xf32>
    %6 = vector.shape_cast %5 : vector<1x128x128xf32> to vector<128x128xf32>
    %cst_9 = arith.constant dense<0.000000e+00> : vector<8x128xf32>
    %7 = tpu.matmul %1, %6, %cst_9 {dimension_numbers = #tpu.dot_dimension_numbers<[1], [0], [0], [1], [0, 0, 1, 1], [], []>} : vector<8x128xf32>, vector<128x128xf32>, vector<8x128xf32> -> vector<8x128xf32>
    %8 = arith.addf %4, %7 : vector<8x128xf32>
    %c0_10 = arith.constant 0 : index
    %c0_11 = arith.constant 0 : index
    %c0_12 = arith.constant 0 : index
    %9 = vector.load %arg6[%c0_10, %c0_11, %c0_12] : memref<3x1x128xf32, #tpu.memory_space<vmem>>, vector<1x1x128xf32>
    %10 = vector.shape_cast %9 : vector<1x1x128xf32> to vector<1x128xf32>
    %11 = vector.broadcast %10 : vector<1x128xf32> to vector<8x128xf32>
    %12 = arith.addf %8, %11 : vector<8x128xf32>
    %c1 = arith.constant 1 : index
    %c0_13 = arith.constant 0 : index
    %c0_14 = arith.constant 0 : index
    %13 = vector.load %arg4[%c1, %c0_13, %c0_14] : memref<3x128x128xf32, #tpu.memory_space<vmem>>, vector<1x128x128xf32>
    %14 = vector.shape_cast %13 : vector<1x128x128xf32> to vector<128x128xf32>
    %cst_15 = arith.constant dense<0.000000e+00> : vector<8x128xf32>
    %15 = tpu.matmul %0, %14, %cst_15 {dimension_numbers = #tpu.dot_dimension_numbers<[1], [0], [0], [1], [0, 0, 1, 1], [], []>} : vector<8x128xf32>, vector<128x128xf32>, vector<8x128xf32> -> vector<8x128xf32>
    %c1_16 = arith.constant 1 : index
    %c0_17 = arith.constant 0 : index
    %c0_18 = arith.constant 0 : index
    %16 = vector.load %arg5[%c1_16, %c0_17, %c0_18] : memref<3x128x128xf32, #tpu.memory_space<vmem>>, vector<1x128x128xf32>
    %17 = vector.shape_cast %16 : vector<1x128x128xf32> to vector<128x128xf32>
    %cst_19 = arith.constant dense<0.000000e+00> : vector<8x128xf32>
    %18 = tpu.matmul %1, %17, %cst_19 {dimension_numbers = #tpu.dot_dimension_numbers<[1], [0], [0], [1], [0, 0, 1, 1], [], []>} : vector<8x128xf32>, vector<128x128xf32>, vector<8x128xf32> -> vector<8x128xf32>
    %19 = arith.addf %15, %18 : vector<8x128xf32>
    %c1_20 = arith.constant 1 : index
    %c0_21 = arith.constant 0 : index
    %c0_22 = arith.constant 0 : index
    %20 = vector.load %arg6[%c1_20, %c0_21, %c0_22] : memref<3x1x128xf32, #tpu.memory_space<vmem>>, vector<1x1x128xf32>
    %21 = vector.shape_cast %20 : vector<1x1x128xf32> to vector<1x128xf32>
    %22 = vector.broadcast %21 : vector<1x128xf32> to vector<8x128xf32>
    %23 = arith.addf %19, %22 : vector<8x128xf32>
    %c2 = arith.constant 2 : index
    %c0_23 = arith.constant 0 : index
    %c0_24 = arith.constant 0 : index
    %24 = vector.load %arg4[%c2, %c0_23, %c0_24] : memref<3x128x128xf32, #tpu.memory_space<vmem>>, vector<1x128x128xf32>
    %25 = vector.shape_cast %24 : vector<1x128x128xf32> to vector<128x128xf32>
    %cst_25 = arith.constant dense<0.000000e+00> : vector<8x128xf32>
    %26 = tpu.matmul %0, %25, %cst_25 {dimension_numbers = #tpu.dot_dimension_numbers<[1], [0], [0], [1], [0, 0, 1, 1], [], []>} : vector<8x128xf32>, vector<128x128xf32>, vector<8x128xf32> -> vector<8x128xf32>
    %c2_26 = arith.constant 2 : index
    %c0_27 = arith.constant 0 : index
    %c0_28 = arith.constant 0 : index
    %27 = vector.load %arg5[%c2_26, %c0_27, %c0_28] : memref<3x128x128xf32, #tpu.memory_space<vmem>>, vector<1x128x128xf32>
    %28 = vector.shape_cast %27 : vector<1x128x128xf32> to vector<128x128xf32>
    %cst_29 = arith.constant dense<0.000000e+00> : vector<8x128xf32>
    %29 = tpu.matmul %1, %28, %cst_29 {dimension_numbers = #tpu.dot_dimension_numbers<[1], [0], [0], [1], [0, 0, 1, 1], [], []>} : vector<8x128xf32>, vector<128x128xf32>, vector<8x128xf32> -> vector<8x128xf32>
    %30 = arith.addf %26, %29 : vector<8x128xf32>
    %c2_30 = arith.constant 2 : index
    %c0_31 = arith.constant 0 : index
    %c0_32 = arith.constant 0 : index
    %31 = vector.load %arg6[%c2_30, %c0_31, %c0_32] : memref<3x1x128xf32, #tpu.memory_space<vmem>>, vector<1x1x128xf32>
    %32 = vector.shape_cast %31 : vector<1x1x128xf32> to vector<1x128xf32>
    %33 = vector.broadcast %32 : vector<1x128xf32> to vector<8x128xf32>
    %34 = arith.addf %30, %33 : vector<8x128xf32>
    %35 = arith.mulf %12, %23 : vector<8x128xf32>
    %36 = arith.mulf %1, %34 : vector<8x128xf32>
    %37 = arith.addf %35, %36 : vector<8x128xf32>
    %c0_33 = arith.constant 0 : index
    %c0_34 = arith.constant 0 : index
    %38 = vector.load %arg7[%c0_33, %c0_34] : memref<8x128xf32, #tpu.memory_space<vmem>>, vector<8x128xf32>
    tpu.vector_store %arg7[%c0_33, %c0_34], %37 {strides = array<i32>} : memref<8x128xf32, #tpu.memory_space<vmem>>, vector<8x128xf32>,
    return
  }
  func.func @transform_0(%arg0: i32, %arg1: i32) -> (i32, i32) {
    %c0_i32 = arith.constant 0 : i32
    %c0_i32_0 = arith.constant 0 : i32
    return %arg1, %c0_i32 : i32, i32
  }
  func.func @transform_1(%arg0: i32, %arg1: i32) -> (i32, i32) {
    %c0_i32 = arith.constant 0 : i32
    %c0_i32_0 = arith.constant 0 : i32
    return %arg1, %c0_i32 : i32, i32
  }
  func.func @transform_2(%arg0: i32, %arg1: i32) -> (i32, i32, i32) {
    %c0_i32 = arith.constant 0 : i32
    %c0_i32_0 = arith.constant 0 : i32
    %c0_i32_1 = arith.constant 0 : i32
    return %c0_i32, %c0_i32_0, %arg0 : i32, i32, i32
  }
  func.func @transform_3(%arg0: i32, %arg1: i32) -> (i32, i32, i32) {
    %c0_i32 = arith.constant 0 : i32
    %c0_i32_0 = arith.constant 0 : i32
    %c0_i32_1 = arith.constant 0 : i32
    return %c0_i32, %c0_i32_0, %arg0 : i32, i32, i32
  }
  func.func @transform_4(%arg0: i32, %arg1: i32) -> (i32, i32, i32) {
    %c0_i32 = arith.constant 0 : i32
    %c0_i32_0 = arith.constant 0 : i32
    %c0_i32_1 = arith.constant 0 : i32
    return %c0_i32, %c0_i32_0, %arg0 : i32, i32, i32
  }
  func.func @transform_5(%arg0: i32, %arg1: i32) -> (i32, i32) {
    %c0_i32 = arith.constant 0 : i32
    return %arg1, %arg0 : i32, i32
  }
}

module attributes {stable_mosaic.version = 11 : i64} {
  func.func @_highway_kernel_first(%arg0: i32, %arg1: i32, %arg2: memref<8x128xf32, #tpu.memory_space<vmem>>, %arg3: memref<8x128xf32, #tpu.memory_space<vmem>>, %arg4: memref<3x128x128xf32, #tpu.memory_space<vmem>>, %arg5: memref<3x128x128xf32, #tpu.memory_space<vmem>>, %arg6: memref<3x1x128xf32, #tpu.memory_space<vmem>>, %arg7: memref<8x128xf32, #tpu.memory_space<vmem>>) attributes {dimension_semantics = [#tpu.dimension_semantics<parallel>, #tpu.dimension_semantics<parallel>], iteration_bounds = array<i64: 1, 1>, scalar_prefetch = 0 : i64, scratch_operands = 0 : i64, tpu.core_type = #tpu.core_type<tc>, window_params = [{transform_indices = @transform_0, window_bounds = array<i64: 8, 128>}, {transform_indices = @transform_1, window_bounds = array<i64: 8, 128>}, {transform_indices = @transform_2, window_bounds = array<i64: 3, 128, 128>}, {transform_indices = @transform_3, window_bounds = array<i64: 3, 128, 128>}, {transform_indices = @transform_4, window_bounds = array<i64: 3, 1, 128>}, {transform_indices = @transform_5, window_bounds = array<i64: 8, 128>}]} {
    %c0 = arith.constant 0 : index
    %c0_0 = arith.constant 0 : index
    %0 = vector.load %arg2[%c0, %c0_0] : memref<8x128xf32, #tpu.memory_space<vmem>>, vector<8x128xf32>
    %c0_1 = arith.constant 0 : index
    %c0_2 = arith.constant 0 : index
    %1 = vector.load %arg3[%c0_1, %c0_2] : memref<8x128xf32, #tpu.memory_space<vmem>>, vector<8x128xf32>
    %c0_3 = arith.constant 0 : index
    %c0_4 = arith.constant 0 : index
    %c0_5 = arith.constant 0 : index
    %2 = vector.load %arg4[%c0_3, %c0_4, %c0_5] : memref<3x128x128xf32, #tpu.memory_space<vmem>>, vector<1x128x128xf32>
    %3 = vector.shape_cast %2 : vector<1x128x128xf32> to vector<128x128xf32>
    %cst = arith.constant dense<0.000000e+00> : vector<8x128xf32>
    %4 = tpu.matmul %0, %3, %cst {dimension_numbers = #tpu.dot_dimension_numbers<[1], [0], [0], [1], [0, 0, 1, 1], [], []>} : vector<8x128xf32>, vector<128x128xf32>, vector<8x128xf32> -> vector<8x128xf32>
    %c0_6 = arith.constant 0 : index
    %c0_7 = arith.constant 0 : index
    %c0_8 = arith.constant 0 : index
    %5 = vector.load %arg5[%c0_6, %c0_7, %c0_8] : memref<3x128x128xf32, #tpu.memory_space<vmem>>, vector<1x128x128xf32>
    %6 = vector.shape_cast %5 : vector<1x128x128xf32> to vector<128x128xf32>
    %cst_9 = arith.constant dense<0.000000e+00> : vector<8x128xf32>
    %7 = tpu.matmul %1, %6, %cst_9 {dimension_numbers = #tpu.dot_dimension_numbers<[1], [0], [0], [1], [0, 0, 1, 1], [], []>} : vector<8x128xf32>, vector<128x128xf32>, vector<8x128xf32> -> vector<8x128xf32>
    %8 = arith.addf %4, %7 : vector<8x128xf32>
    %c0_10 = arith.constant 0 : index
    %c0_11 = arith.constant 0 : index
    %c0_12 = arith.constant 0 : index
    %9 = vector.load %arg6[%c0_10, %c0_11, %c0_12] : memref<3x1x128xf32, #tpu.memory_space<vmem>>, vector<1x1x128xf32>
    %10 = vector.shape_cast %9 : vector<1x1x128xf32> to vector<1x128xf32>
    %11 = vector.broadcast %10 : vector<1x128xf32> to vector<8x128xf32>
    %12 = arith.addf %8, %11 : vector<8x128xf32>
    %c1 = arith.constant 1 : index
    %c0_13 = arith.constant 0 : index
    %c0_14 = arith.constant 0 : index
    %13 = vector.load %arg4[%c1, %c0_13, %c0_14] : memref<3x128x128xf32, #tpu.memory_space<vmem>>, vector<1x128x128xf32>
    %14 = vector.shape_cast %13 : vector<1x128x128xf32> to vector<128x128xf32>
    %cst_15 = arith.constant dense<0.000000e+00> : vector<8x128xf32>
    %15 = tpu.matmul %0, %14, %cst_15 {dimension_numbers = #tpu.dot_dimension_numbers<[1], [0], [0], [1], [0, 0, 1, 1], [], []>} : vector<8x128xf32>, vector<128x128xf32>, vector<8x128xf32> -> vector<8x128xf32>
    %c1_16 = arith.constant 1 : index
    %c0_17 = arith.constant 0 : index
    %c0_18 = arith.constant 0 : index
    %16 = vector.load %arg5[%c1_16, %c0_17, %c0_18] : memref<3x128x128xf32, #tpu.memory_space<vmem>>, vector<1x128x128xf32>
    %17 = vector.shape_cast %16 : vector<1x128x128xf32> to vector<128x128xf32>
    %cst_19 = arith.constant dense<0.000000e+00> : vector<8x128xf32>
    %18 = tpu.matmul %1, %17, %cst_19 {dimension_numbers = #tpu.dot_dimension_numbers<[1], [0], [0], [1], [0, 0, 1, 1], [], []>} : vector<8x128xf32>, vector<128x128xf32>, vector<8x128xf32> -> vector<8x128xf32>
    %19 = arith.addf %15, %18 : vector<8x128xf32>
    %c1_20 = arith.constant 1 : index
    %c0_21 = arith.constant 0 : index
    %c0_22 = arith.constant 0 : index
    %20 = vector.load %arg6[%c1_20, %c0_21, %c0_22] : memref<3x1x128xf32, #tpu.memory_space<vmem>>, vector<1x1x128xf32>
    %21 = vector.shape_cast %20 : vector<1x1x128xf32> to vector<1x128xf32>
    %22 = vector.broadcast %21 : vector<1x128xf32> to vector<8x128xf32>
    %23 = arith.addf %19, %22 : vector<8x128xf32>
    %c2 = arith.constant 2 : index
    %c0_23 = arith.constant 0 : index
    %c0_24 = arith.constant 0 : index
    %24 = vector.load %arg4[%c2, %c0_23, %c0_24] : memref<3x128x128xf32, #tpu.memory_space<vmem>>, vector<1x128x128xf32>
    %25 = vector.shape_cast %24 : vector<1x128x128xf32> to vector<128x128xf32>
    %cst_25 = arith.constant dense<0.000000e+00> : vector<8x128xf32>
    %26 = tpu.matmul %0, %25, %cst_25 {dimension_numbers = #tpu.dot_dimension_numbers<[1], [0], [0], [1], [0, 0, 1, 1], [], []>} : vector<8x128xf32>, vector<128x128xf32>, vector<8x128xf32> -> vector<8x128xf32>
    %c2_26 = arith.constant 2 : index
    %c0_27 = arith.constant 0 : index
    %c0_28 = arith.constant 0 : index
    %27 = vector.load %arg5[%c2_26, %c0_27, %c0_28] : memref<3x128x128xf32, #tpu.memory_space<vmem>>, vector<1x128x128xf32>
    %28 = vector.shape_cast %27 : vector<1x128x128xf32> to vector<128x128xf32>
    %cst_29 = arith.constant dense<0.000000e+00> : vector<8x128xf32>
    %29 = tpu.matmul %1, %28, %cst_29 {dimension_numbers = #tpu.dot_dimension_numbers<[1], [0], [0], [1], [0, 0, 1, 1], [], []>} : vector<8x128xf32>, vector<128x128xf32>, vector<8x128xf32> -> vector<8x128xf32>
    %30 = arith.addf %26, %29 : vector<8x128xf32>
    %c2_30 = arith.constant 2 : index
    %c0_31 = arith.constant 0 : index
    %c0_32 = arith.constant 0 : index
    %31 = vector.load %arg6[%c2_30, %c0_31, %c0_32] : memref<3x1x128xf32, #tpu.memory_space<vmem>>, vector<1x1x128xf32>
    %32 = vector.shape_cast %31 : vector<1x1x128xf32> to vector<1x128xf32>
    %33 = vector.broadcast %32 : vector<1x128xf32> to vector<8x128xf32>
    %34 = arith.addf %30, %33 : vector<8x128xf32>
    %35 = arith.mulf %12, %23 : vector<8x128xf32>
    %36 = arith.mulf %1, %34 : vector<8x128xf32>
    %37 = arith.addf %35, %36 : vector<8x128xf32>
    %c0_33 = arith.constant 0 : index
    %c0_34 = arith.constant 0 : index
    %38 = vector.load %arg7[%c0_33, %c0_34] : memref<8x128xf32, #tpu.memory_space<vmem>>, vector<8x128xf32>
    tpu.vector_store %arg7[%c0_33, %c0_34], %37 {strides = array<i32>} : memref<8x128xf32, #tpu.memory_space<vmem>>, vector<8x128xf32>,
    return
  }
  func.func @transform_0(%arg0: i32, %arg1: i32) -> (i32, i32) {
    %c0_i32 = arith.constant 0 : i32
    %c0_i32_0 = arith.constant 0 : i32
    return %arg1, %c0_i32 : i32, i32
  }
  func.func @transform_1(%arg0: i32, %arg1: i32) -> (i32, i32) {
    %c0_i32 = arith.constant 0 : i32
    %c0_i32_0 = arith.constant 0 : i32
    return %arg1, %c0_i32 : i32, i32
  }
  func.func @transform_2(%arg0: i32, %arg1: i32) -> (i32, i32, i32) {
    %c0_i32 = arith.constant 0 : i32
    %c0_i32_0 = arith.constant 0 : i32
    %c0_i32_1 = arith.constant 0 : i32
    return %c0_i32, %c0_i32_0, %arg0 : i32, i32, i32
  }
  func.func @transform_3(%arg0: i32, %arg1: i32) -> (i32, i32, i32) {
    %c0_i32 = arith.constant 0 : i32
    %c0_i32_0 = arith.constant 0 : i32
    %c0_i32_1 = arith.constant 0 : i32
    return %c0_i32, %c0_i32_0, %arg0 : i32, i32, i32
  }
  func.func @transform_4(%arg0: i32, %arg1: i32) -> (i32, i32, i32) {
    %c0_i32 = arith.constant 0 : i32
    %c0_i32_0 = arith.constant 0 : i32
    %c0_i32_1 = arith.constant 0 : i32
    return %c0_i32, %c0_i32_0, %arg0 : i32, i32, i32
  }
  func.func @transform_5(%arg0: i32, %arg1: i32) -> (i32, i32) {
    %c0_i32 = arith.constant 0 : i32
    return %arg1, %arg0 : i32, i32
  }
}

</mosaic_0001>

<llo_original>
// kernel: tpu_custom_call.1
$region0: #{tpu_custom_call.1}
  #allocation0 [shape = 'u32[]', space=smem, size = 0x4, offset = 0x4, fixed_abs, tag = 'smem constant byte address 0x4 - core index']
  #allocation1 [shape = 'u32[144,128]{1,0:T(1,128)}', space=vmem, size = 0x12000, scoped, tag = 'internal scratch']
  %s0 = inlined_call_operand.hbm [shape: f32[8,128], index: 0, kind: input, shape index: {}]
  %s1 = inlined_call_operand.hbm [shape: f32[8,128], index: 1, kind: input, shape index: {}]
  %s2 = inlined_call_operand.hbm [shape: f32[3,128,128], index: 2, kind: input, shape index: {}]
  %s3 = inlined_call_operand.hbm [shape: f32[3,128,128], index: 3, kind: input, shape index: {}]
  %s4 = inlined_call_operand.vmem [shape: f32[3,1,128], index: 4, kind: input, shape index: {}]
  %s5 = inlined_call_operand.hbm [shape: f32[8,128], index: 5, kind: output, shape index: {}]
  %s6 = sld [smem:[#allocation0]]
  $region46: #{tpu_custom_call.1} parent=0
    _
  %s8 = ssub.s32 1, %s6
  %s9 = scalar_select 0, %s8, %s6
  $region1: #{tpu_custom_call.1} parent=0
    #allocation2 [shape = 'u8[4096]{0}', space=vmem, size = 0x1000, scoped, tag = 'input window, operand 0, single buffered']
    #allocation3 [shape = 's32[1]{0}', space=sflag, size = 0x4, scoped, tag = 'scoped memory for tpu_custom_call.1']
    #allocation4 [shape = 's32[1]{0}', space=sflag, size = 0x4, scoped, tag = 'scoped memory for tpu_custom_call.1']
    #allocation5 [shape = 'u8[4096]{0}', space=vmem, size = 0x1000, scoped, tag = 'input window, operand 1, single buffered']
    #allocation6 [shape = 's32[1]{0}', space=sflag, size = 0x4, scoped, tag = 'scoped memory for tpu_custom_call.1']
    #allocation7 [shape = 'u8[196608]{0}', space=vmem, size = 0x30000, scoped, tag = 'input window, operand 2, single buffered']
    #allocation8 [shape = 'u8[196608]{0}', space=vmem, size = 0x30000, scoped, tag = 'input window, operand 3, single buffered']
    #allocation9 [shape = 's32[1]{0}', space=sflag, size = 0x4, scoped, tag = 'scoped memory for tpu_custom_call.1']
    #allocation10 [shape = 'u8[4096]{0}', space=vmem, size = 0x1000, scoped, tag = 'output window, operand 0, single buffered']
    %10 = vsyncpa [#allocation3], 0
    %11 = vsyncpa [#allocation6], 0
    %12 = vsyncpa [#allocation9], 0
    %13 = vsyncpa [#allocation4], 0
    // Predicated region
    $region2: #{tpu_custom_call.1} parent=1 // pred_check
      _
    $region3: #{tpu_custom_call.1} parent=1 // pred_check_branch
      %15 = sbr.rel (0) target = $region5
    $region4: #{tpu_custom_call.1} parent=1 // pred_region
      %s17 = ssub.s32 128, 128
      %18 = vsyncadd [#allocation3], %s17
      %s20 = sshll.u32 [#allocation2], 4
      %s21 = int_to_ptr.vmem [resolvable:$true] %s20
      %23 = dma.hbm_to_vmem [thread:$0]  %s0, 128, %s21, [#allocation3]
    $region5: #{tpu_custom_call.1} parent=1 // pred_fallthru
      _
    // Predicated region
    $region6: #{tpu_custom_call.1} parent=1 // pred_check
      _
    $region7: #{tpu_custom_call.1} parent=1 // pred_check_branch
      %25 = sbr.rel (0) target = $region9
    $region8: #{tpu_custom_call.1} parent=1 // pred_region
      %s27 = ssub.s32 128, 128
      %28 = vsyncadd [#allocation6], %s27
      %s30 = sshll.u32 [#allocation5], 4
      %s31 = int_to_ptr.vmem [resolvable:$true] %s30
      %33 = dma.hbm_to_vmem [thread:$0]  %s1, 128, %s31, [#allocation6]
    $region9: #{tpu_custom_call.1} parent=1 // pred_fallthru
      _
    // Predicated region
    $region10: #{tpu_custom_call.1} parent=1 // pred_check
      _
    $region11: #{tpu_custom_call.1} parent=1 // pred_check_branch
      %35 = sbr.rel (0) target = $region13
    $region12: #{tpu_custom_call.1} parent=1 // pred_region
      %s37 = ssub.s32 6144, 6144
      %38 = vsyncadd [#allocation6], %s37
      %s39 = sshll.u32 [#allocation7], 4
      %s40 = int_to_ptr.vmem [resolvable:$true] %s39
      %45 = dma.hbm_to_vmem [thread:$0]  %s2, 6144, %s40, [#allocation6], 128, 128, 8
    $region13: #{tpu_custom_call.1} parent=1 // pred_fallthru
      _
    // Predicated region
    $region14: #{tpu_custom_call.1} parent=1 // pred_check
      _
    $region15: #{tpu_custom_call.1} parent=1 // pred_check_branch
      %47 = sbr.rel (0) target = $region17
    $region16: #{tpu_custom_call.1} parent=1 // pred_region
      %s49 = ssub.s32 6144, 6144
      %50 = vsyncadd [#allocation9], %s49
      %s51 = sshll.u32 [#allocation8], 4
      %s52 = int_to_ptr.vmem [resolvable:$true] %s51
      %57 = dma.hbm_to_vmem [thread:$0]  %s3, 6144, %s52, [#allocation9], 128, 128, 8
    $region17: #{tpu_custom_call.1} parent=1 // pred_fallthru
      _
    // Predicated region
    $region18: #{tpu_custom_call.1} parent=1 // pred_check
      _
    $region19: #{tpu_custom_call.1} parent=1 // pred_check_branch
      %59 = sbr.rel (0) target = $region21
    $region20: #{tpu_custom_call.1} parent=1 // pred_region
      _
    $region21: #{tpu_custom_call.1} parent=1 // pred_fallthru
      _
    // Predicated region
    $region22: #{tpu_custom_call.1} parent=1 // pred_check
      _
    $region23: #{tpu_custom_call.1} parent=1 // pred_check_branch
      %61 = sbr.rel (0) target = $region25
    $region24: #{tpu_custom_call.1} parent=1 // pred_region
      %62 = dma.done [#allocation3], 128
    $region25: #{tpu_custom_call.1} parent=1 // pred_fallthru
      _
    // Predicated region
    $region26: #{tpu_custom_call.1} parent=1 // pred_check
      _
    $region27: #{tpu_custom_call.1} parent=1 // pred_check_branch
      %64 = sbr.rel (0) target = $region29
    $region28: #{tpu_custom_call.1} parent=1 // pred_region
      %65 = dma.done [#allocation6], 128
    $region29: #{tpu_custom_call.1} parent=1 // pred_fallthru
      _
    // Predicated region
    $region30: #{tpu_custom_call.1} parent=1 // pred_check
      _
    $region31: #{tpu_custom_call.1} parent=1 // pred_check_branch
      %67 = sbr.rel (0) target = $region33
    $region32: #{tpu_custom_call.1} parent=1 // pred_region
      %68 = dma.done [#allocation6], 6144
    $region33: #{tpu_custom_call.1} parent=1 // pred_fallthru
      _
    // Predicated region
    $region34: #{tpu_custom_call.1} parent=1 // pred_check
      _
    $region35: #{tpu_custom_call.1} parent=1 // pred_check_branch
      %70 = sbr.rel (0) target = $region37
    $region36: #{tpu_custom_call.1} parent=1 // pred_region
      %71 = dma.done [#allocation9], 6144
    $region37: #{tpu_custom_call.1} parent=1 // pred_fallthru
      _
    %v72 = vld [vmem:[#allocation2] sm:$0xff]
    %v73 = vld [vmem:[#allocation5] sm:$0xff]
    %v74 = vld [vmem:[#allocation7] sm:$0xff]
    %v75 = vld [vmem:[#allocation7 + $0x8] sm:$0xff]
    %v76 = vld [vmem:[#allocation7 + $0x10] sm:$0xff]
    %v77 = vld [vmem:[#allocation7 + $0x18] sm:$0xff]
    %v78 = vld [vmem:[#allocation7 + $0x20] sm:$0xff]
    %v79 = vld [vmem:[#allocation7 + $0x28] sm:$0xff]
    %v80 = vld [vmem:[#allocation7 + $0x30] sm:$0xff]
    %v81 = vld [vmem:[#allocation7 + $0x38] sm:$0xff]
    %v82 = vld [vmem:[#allocation7 + $0x40] sm:$0xff]
    %v83 = vld [vmem:[#allocation7 + $0x48] sm:$0xff]
    %v84 = vld [vmem:[#allocation7 + $0x50] sm:$0xff]
    %v85 = vld [vmem:[#allocation7 + $0x58] sm:$0xff]
    %v86 = vld [vmem:[#allocation7 + $0x60] sm:$0xff]
    %v87 = vld [vmem:[#allocation7 + $0x68] sm:$0xff]
    %v88 = vld [vmem:[#allocation7 + $0x70] sm:$0xff]
    %v89 = vld [vmem:[#allocation7 + $0x78] sm:$0xff]
    %v90 = vld [vmem:[#allocation8] sm:$0xff]
    %v91 = vld [vmem:[#allocation8 + $0x8] sm:$0xff]
    %v92 = vld [vmem:[#allocation8 + $0x10] sm:$0xff]
    %v93 = vld [vmem:[#allocation8 + $0x18] sm:$0xff]
    %v94 = vld [vmem:[#allocation8 + $0x20] sm:$0xff]
    %v95 = vld [vmem:[#allocation8 + $0x28] sm:$0xff]
    %v96 = vld [vmem:[#allocation8 + $0x30] sm:$0xff]
    %v97 = vld [vmem:[#allocation8 + $0x38] sm:$0xff]
    %v98 = vld [vmem:[#allocation8 + $0x40] sm:$0xff]
    %v99 = vld [vmem:[#allocation8 + $0x48] sm:$0xff]
    %v100 = vld [vmem:[#allocation8 + $0x50] sm:$0xff]
    %v101 = vld [vmem:[#allocation8 + $0x58] sm:$0xff]
    %v102 = vld [vmem:[#allocation8 + $0x60] sm:$0xff]
    %v103 = vld [vmem:[#allocation8 + $0x68] sm:$0xff]
    %v104 = vld [vmem:[#allocation8 + $0x70] sm:$0xff]
    %v105 = vld [vmem:[#allocation8 + $0x78] sm:$0xff]
    %106 = vmatprep.subr.mxu0 0.0
    %107 = vmatpush1.msra.mxu0 %v105
    %108 = vmatprep.subr.mxu0 0.0
    %109 = vmatpush1.msra.mxu0 %v104
    %110 = vmatprep.subr.mxu0 0.0
    %111 = vmatpush1.msra.mxu0 %v103
    %112 = vmatprep.subr.mxu0 0.0
    %113 = vmatpush1.msra.mxu0 %v102
    %114 = vmatprep.subr.mxu0 0.0
    %115 = vmatpush1.msra.mxu0 %v101
    %116 = vmatprep.subr.mxu0 0.0
    %117 = vmatpush1.msra.mxu0 %v100
    %118 = vmatprep.subr.mxu0 0.0
    %119 = vmatpush1.msra.mxu0 %v99
    %120 = vmatprep.subr.mxu0 0.0
    %121 = vmatpush1.msra.mxu0 %v98
    %122 = vmatprep.subr.mxu0 0.0
    %123 = vmatpush1.msra.mxu0 %v97
    %124 = vmatprep.subr.mxu0 0.0
    %125 = vmatpush1.msra.mxu0 %v96
    %126 = vmatprep.subr.mxu0 0.0
    %127 = vmatpush1.msra.mxu0 %v95
    %128 = vmatprep.subr.mxu0 0.0
    %129 = vmatpush1.msra.mxu0 %v94
    %130 = vmatprep.subr.mxu0 0.0
    %131 = vmatpush1.msra.mxu0 %v93
    %132 = vmatprep.subr.mxu0 0.0
    %133 = vmatpush1.msra.mxu0 %v92
    %134 = vmatprep.subr.mxu0 0.0
    %135 = vmatpush1.msra.mxu0 %v91
    %136 = vmatprep.subr.mxu0 0.0
    %137 = vmatpush1.msra.mxu0 %v90
    %138 = vmatprep.subr.mxu0 0.0
    %139 = vmatpush2.msra.mxu0 0.0
    %140 = vmatprep.subr.mxu0 0.0
    %141 = vmatpush2.msra.mxu0 0.0
    %142 = vmatprep.subr.mxu0 0.0
    %143 = vmatpush2.msra.mxu0 0.0
    %144 = vmatprep.subr.mxu0 0.0
    %145 = vmatpush2.msra.mxu0 0.0
    %146 = vmatprep.subr.mxu0 0.0
    %147 = vmatpush2.msra.mxu0 0.0
    %148 = vmatprep.subr.mxu0 0.0
    %149 = vmatpush2.msra.mxu0 0.0
    %150 = vmatprep.subr.mxu0 0.0
    %151 = vmatpush2.msra.mxu0 0.0
    %152 = vmatprep.subr.mxu0 0.0
    %153 = vmatpush2.msra.mxu0 0.0
    %154 = vmatprep.subr.mxu0 0.0
    %155 = vmatpush2.msra.mxu0 0.0
    %156 = vmatprep.subr.mxu0 0.0
    %157 = vmatpush2.msra.mxu0 0.0
    %158 = vmatprep.subr.mxu0 0.0
    %159 = vmatpush2.msra.mxu0 0.0
    %160 = vmatprep.subr.mxu0 0.0
    %161 = vmatpush2.msra.mxu0 0.0
    %162 = vmatprep.subr.mxu0 0.0
    %163 = vmatpush2.msra.mxu0 0.0
    %164 = vmatprep.subr.mxu0 0.0
    %165 = vmatpush2.msra.mxu0 0.0
    %166 = vmatprep.subr.mxu0 0.0
    %167 = vmatpush2.msra.mxu0 0.0
    %168 = vmatprep.subr.mxu0 0.0
    %169 = vmatpush2.msra.mxu0 0.0
    %170 = vmatprep.mubr.f32.mxu0 0.0
    %171 = vmatmul.mubr.f32.gmra.mxu0 %v73
    %v172 = vpop.f32.mrf.mxu0
    %v173 = vadd.f32 0.0, %v172
    %v174 = vpop.f32.mrf.mxu0
    %175 = vdwg.mxu0
    %176 = vmatprep.subr.mxu0 0.0
    %177 = vmatpush1.msra.mxu0 %v89
    %178 = vmatprep.subr.mxu0 0.0
    %179 = vmatpush1.msra.mxu0 %v88
    %180 = vmatprep.subr.mxu0 0.0
    %181 = vmatpush1.msra.mxu0 %v87
    %182 = vmatprep.subr.mxu0 0.0
    %183 = vmatpush1.msra.mxu0 %v86
    %184 = vmatprep.subr.mxu0 0.0
    %185 = vmatpush1.msra.mxu0 %v85
    %186 = vmatprep.subr.mxu0 0.0
    %187 = vmatpush1.msra.mxu0 %v84
    %188 = vmatprep.subr.mxu0 0.0
    %189 = vmatpush1.msra.mxu0 %v83
    %190 = vmatprep.subr.mxu0 0.0
    %191 = vmatpush1.msra.mxu0 %v82
    %192 = vmatprep.subr.mxu0 0.0
    %193 = vmatpush1.msra.mxu0 %v81
    %194 = vmatprep.subr.mxu0 0.0
    %195 = vmatpush1.msra.mxu0 %v80
    %196 = vmatprep.subr.mxu0 0.0
    %197 = vmatpush1.msra.mxu0 %v79
    %198 = vmatprep.subr.mxu0 0.0
    %199 = vmatpush1.msra.mxu0 %v78
    %200 = vmatprep.subr.mxu0 0.0
    %201 = vmatpush1.msra.mxu0 %v77
    %202 = vmatprep.subr.mxu0 0.0
    %203 = vmatpush1.msra.mxu0 %v76
    %204 = vmatprep.subr.mxu0 0.0
    %205 = vmatpush1.msra.mxu0 %v75
    %206 = vmatprep.subr.mxu0 0.0
    %207 = vmatpush1.msra.mxu0 %v74
    %208 = vmatprep.subr.mxu0 0.0
    %209 = vmatpush2.msra.mxu0 0.0
    %210 = vmatprep.subr.mxu0 0.0
    %211 = vmatpush2.msra.mxu0 0.0
    %212 = vmatprep.subr.mxu0 0.0
    %213 = vmatpush2.msra.mxu0 0.0
    %214 = vmatprep.subr.mxu0 0.0
    %215 = vmatpush2.msra.mxu0 0.0
    %216 = vmatprep.subr.mxu0 0.0
    %217 = vmatpush2.msra.mxu0 0.0
    %218 = vmatprep.subr.mxu0 0.0
    %219 = vmatpush2.msra.mxu0 0.0
    %220 = vmatprep.subr.mxu0 0.0
    %221 = vmatpush2.msra.mxu0 0.0
    %222 = vmatprep.subr.mxu0 0.0
    %223 = vmatpush2.msra.mxu0 0.0
    %224 = vmatprep.subr.mxu0 0.0
    %225 = vmatpush2.msra.mxu0 0.0
    %226 = vmatprep.subr.mxu0 0.0
    %227 = vmatpush2.msra.mxu0 0.0
    %228 = vmatprep.subr.mxu0 0.0
    %229 = vmatpush2.msra.mxu0 0.0
    %230 = vmatprep.subr.mxu0 0.0
    %231 = vmatpush2.msra.mxu0 0.0
    %232 = vmatprep.subr.mxu0 0.0
    %233 = vmatpush2.msra.mxu0 0.0
    %234 = vmatprep.subr.mxu0 0.0
    %235 = vmatpush2.msra.mxu0 0.0
    %236 = vmatprep.subr.mxu0 0.0
    %237 = vmatpush2.msra.mxu0 0.0
    %238 = vmatprep.subr.mxu0 0.0
    %239 = vmatpush2.msra.mxu0 0.0
    %240 = vmatprep.mubr.f32.mxu0 0.0
    %241 = vmatmul.mubr.f32.gmra.mxu0 %v72
    %v242 = vpop.f32.mrf.mxu0
    %v243 = vadd.f32 %v173, %v242
    %v244 = vpop.f32.mrf.mxu0
    %245 = vdwg.mxu0
    %v246 = vld [vmem:[%s4] sm:$0x1]
    %v248 = vlaneseq
    %v249 = vshrl.u32 %v248, 7
    %v250 = vsub.s32 0, %v249
    %v251 = vrot.slane %v246, %v250
    %v253 = vadd.f32 %v243, %v251
    %s254 = scalar_lea.vmem [#allocation7], 128
    %v255 = vld [vmem:[%s254] sm:$0xff]
    %v256 = vld [vmem:[%s254 + $0x8] sm:$0xff]
    %v257 = vld [vmem:[%s254 + $0x10] sm:$0xff]
    %v258 = vld [vmem:[%s254 + $0x18] sm:$0xff]
    %v259 = vld [vmem:[%s254 + $0x20] sm:$0xff]
    %v260 = vld [vmem:[%s254 + $0x28] sm:$0xff]
    %v261 = vld [vmem:[%s254 + $0x30] sm:$0xff]
    %v262 = vld [vmem:[%s254 + $0x38] sm:$0xff]
    %v263 = vld [vmem:[%s254 + $0x40] sm:$0xff]
    %v264 = vld [vmem:[%s254 + $0x48] sm:$0xff]
    %v265 = vld [vmem:[%s254 + $0x50] sm:$0xff]
    %v266 = vld [vmem:[%s254 + $0x58] sm:$0xff]
    %v267 = vld [vmem:[%s254 + $0x60] sm:$0xff]
    %v268 = vld [vmem:[%s254 + $0x68] sm:$0xff]
    %v269 = vld [vmem:[%s254 + $0x70] sm:$0xff]
    %v270 = vld [vmem:[%s254 + $0x78] sm:$0xff]
    %s271 = scalar_lea.vmem [#allocation8], 128
    %v272 = vld [vmem:[%s271] sm:$0xff]
    %v273 = vld [vmem:[%s271 + $0x8] sm:$0xff]
    %v274 = vld [vmem:[%s271 + $0x10] sm:$0xff]
    %v275 = vld [vmem:[%s271 + $0x18] sm:$0xff]
    %v276 = vld [vmem:[%s271 + $0x20] sm:$0xff]
    %v277 = vld [vmem:[%s271 + $0x28] sm:$0xff]
    %v278 = vld [vmem:[%s271 + $0x30] sm:$0xff]
    %v279 = vld [vmem:[%s271 + $0x38] sm:$0xff]
    %v280 = vld [vmem:[%s271 + $0x40] sm:$0xff]
    %v281 = vld [vmem:[%s271 + $0x48] sm:$0xff]
    %v282 = vld [vmem:[%s271 + $0x50] sm:$0xff]
    %v283 = vld [vmem:[%s271 + $0x58] sm:$0xff]
    %v284 = vld [vmem:[%s271 + $0x60] sm:$0xff]
    %v285 = vld [vmem:[%s271 + $0x68] sm:$0xff]
    %v286 = vld [vmem:[%s271 + $0x70] sm:$0xff]
    %v287 = vld [vmem:[%s271 + $0x78] sm:$0xff]
    %288 = vmatprep.subr.mxu0 0.0
    %289 = vmatpush1.msra.mxu0 %v287
    %290 = vmatprep.subr.mxu0 0.0
    %291 = vmatpush1.msra.mxu0 %v286
    %292 = vmatprep.subr.mxu0 0.0
    %293 = vmatpush1.msra.mxu0 %v285
    %294 = vmatprep.subr.mxu0 0.0
    %295 = vmatpush1.msra.mxu0 %v284
    %296 = vmatprep.subr.mxu0 0.0
    %297 = vmatpush1.msra.mxu0 %v283
    %298 = vmatprep.subr.mxu0 0.0
    %299 = vmatpush1.msra.mxu0 %v282
    %300 = vmatprep.subr.mxu0 0.0
    %301 = vmatpush1.msra.mxu0 %v281
    %302 = vmatprep.subr.mxu0 0.0
    %303 = vmatpush1.msra.mxu0 %v280
    %304 = vmatprep.subr.mxu0 0.0
    %305 = vmatpush1.msra.mxu0 %v279
    %306 = vmatprep.subr.mxu0 0.0
    %307 = vmatpush1.msra.mxu0 %v278
    %308 = vmatprep.subr.mxu0 0.0
    %309 = vmatpush1.msra.mxu0 %v277
    %310 = vmatprep.subr.mxu0 0.0
    %311 = vmatpush1.msra.mxu0 %v276
    %312 = vmatprep.subr.mxu0 0.0
    %313 = vmatpush1.msra.mxu0 %v275
    %314 = vmatprep.subr.mxu0 0.0
    %315 = vmatpush1.msra.mxu0 %v274
    %316 = vmatprep.subr.mxu0 0.0
    %317 = vmatpush1.msra.mxu0 %v273
    %318 = vmatprep.subr.mxu0 0.0
    %319 = vmatpush1.msra.mxu0 %v272
    %320 = vmatprep.subr.mxu0 0.0
    %321 = vmatpush2.msra.mxu0 0.0
    %322 = vmatprep.subr.mxu0 0.0
    %323 = vmatpush2.msra.mxu0 0.0
    %324 = vmatprep.subr.mxu0 0.0
    %325 = vmatpush2.msra.mxu0 0.0
    %326 = vmatprep.subr.mxu0 0.0
    %327 = vmatpush2.msra.mxu0 0.0
    %328 = vmatprep.subr.mxu0 0.0
    %329 = vmatpush2.msra.mxu0 0.0
    %330 = vmatprep.subr.mxu0 0.0
    %331 = vmatpush2.msra.mxu0 0.0
    %332 = vmatprep.subr.mxu0 0.0
    %333 = vmatpush2.msra.mxu0 0.0
    %334 = vmatprep.subr.mxu0 0.0
    %335 = vmatpush2.msra.mxu0 0.0
    %336 = vmatprep.subr.mxu0 0.0
    %337 = vmatpush2.msra.mxu0 0.0
    %338 = vmatprep.subr.mxu0 0.0
    %339 = vmatpush2.msra.mxu0 0.0
    %340 = vmatprep.subr.mxu0 0.0
    %341 = vmatpush2.msra.mxu0 0.0
    %342 = vmatprep.subr.mxu0 0.0
    %343 = vmatpush2.msra.mxu0 0.0
    %344 = vmatprep.subr.mxu0 0.0
    %345 = vmatpush2.msra.mxu0 0.0
    %346 = vmatprep.subr.mxu0 0.0
    %347 = vmatpush2.msra.mxu0 0.0
    %348 = vmatprep.subr.mxu0 0.0
    %349 = vmatpush2.msra.mxu0 0.0
    %350 = vmatprep.subr.mxu0 0.0
    %351 = vmatpush2.msra.mxu0 0.0
    %352 = vmatprep.mubr.f32.mxu0 0.0
    %353 = vmatmul.mubr.f32.gmra.mxu0 %v73
    %v354 = vpop.f32.mrf.mxu0
    %v355 = vadd.f32 0.0, %v354
    %v356 = vpop.f32.mrf.mxu0
    %357 = vdwg.mxu0
    %358 = vmatprep.subr.mxu0 0.0
    %359 = vmatpush1.msra.mxu0 %v270
    %360 = vmatprep.subr.mxu0 0.0
    %361 = vmatpush1.msra.mxu0 %v269
    %362 = vmatprep.subr.mxu0 0.0
    %363 = vmatpush1.msra.mxu0 %v268
    %364 = vmatprep.subr.mxu0 0.0
    %365 = vmatpush1.msra.mxu0 %v267
    %366 = vmatprep.subr.mxu0 0.0
    %367 = vmatpush1.msra.mxu0 %v266
    %368 = vmatprep.subr.mxu0 0.0
    %369 = vmatpush1.msra.mxu0 %v265
    %370 = vmatprep.subr.mxu0 0.0
    %371 = vmatpush1.msra.mxu0 %v264
    %372 = vmatprep.subr.mxu0 0.0
    %373 = vmatpush1.msra.mxu0 %v263
    %374 = vmatprep.subr.mxu0 0.0
    %375 = vmatpush1.msra.mxu0 %v262
    %376 = vmatprep.subr.mxu0 0.0
    %377 = vmatpush1.msra.mxu0 %v261
    %378 = vmatprep.subr.mxu0 0.0
    %379 = vmatpush1.msra.mxu0 %v260
    %380 = vmatprep.subr.mxu0 0.0
    %381 = vmatpush1.msra.mxu0 %v259
    %382 = vmatprep.subr.mxu0 0.0
    %383 = vmatpush1.msra.mxu0 %v258
    %384 = vmatprep.subr.mxu0 0.0
    %385 = vmatpush1.msra.mxu0 %v257
    %386 = vmatprep.subr.mxu0 0.0
    %387 = vmatpush1.msra.mxu0 %v256
    %388 = vmatprep.subr.mxu0 0.0
    %389 = vmatpush1.msra.mxu0 %v255
    %390 = vmatprep.subr.mxu0 0.0
    %391 = vmatpush2.msra.mxu0 0.0
    %392 = vmatprep.subr.mxu0 0.0
    %393 = vmatpush2.msra.mxu0 0.0
    %394 = vmatprep.subr.mxu0 0.0
    %395 = vmatpush2.msra.mxu0 0.0
    %396 = vmatprep.subr.mxu0 0.0
    %397 = vmatpush2.msra.mxu0 0.0
    %398 = vmatprep.subr.mxu0 0.0
    %399 = vmatpush2.msra.mxu0 0.0
    %400 = vmatprep.subr.mxu0 0.0
    %401 = vmatpush2.msra.mxu0 0.0
    %402 = vmatprep.subr.mxu0 0.0
    %403 = vmatpush2.msra.mxu0 0.0
    %404 = vmatprep.subr.mxu0 0.0
    %405 = vmatpush2.msra.mxu0 0.0
    %406 = vmatprep.subr.mxu0 0.0
    %407 = vmatpush2.msra.mxu0 0.0
    %408 = vmatprep.subr.mxu0 0.0
    %409 = vmatpush2.msra.mxu0 0.0
    %410 = vmatprep.subr.mxu0 0.0
    %411 = vmatpush2.msra.mxu0 0.0
    %412 = vmatprep.subr.mxu0 0.0
    %413 = vmatpush2.msra.mxu0 0.0
    %414 = vmatprep.subr.mxu0 0.0
    %415 = vmatpush2.msra.mxu0 0.0
    %416 = vmatprep.subr.mxu0 0.0
    %417 = vmatpush2.msra.mxu0 0.0
    %418 = vmatprep.subr.mxu0 0.0
    %419 = vmatpush2.msra.mxu0 0.0
    %420 = vmatprep.subr.mxu0 0.0
    %421 = vmatpush2.msra.mxu0 0.0
    %422 = vmatprep.mubr.f32.mxu0 0.0
    %423 = vmatmul.mubr.f32.gmra.mxu0 %v72
    %v424 = vpop.f32.mrf.mxu0
    %v425 = vadd.f32 %v355, %v424
    %v426 = vpop.f32.mrf.mxu0
    %427 = vdwg.mxu0
    %s428 = scalar_lea.vmem %s4, 1
    %v429 = vld [vmem:[%s428] sm:$0x1]
    %v431 = vlaneseq
    %v432 = vshrl.u32 %v431, 7
    %v433 = vsub.s32 0, %v432
    %v434 = vrot.slane %v429, %v433
    %v436 = vadd.f32 %v425, %v434
    %s437 = scalar_lea.vmem [#allocation7], 256
    %v438 = vld [vmem:[%s437] sm:$0xff]
    %v439 = vld [vmem:[%s437 + $0x8] sm:$0xff]
    %v440 = vld [vmem:[%s437 + $0x10] sm:$0xff]
    %v441 = vld [vmem:[%s437 + $0x18] sm:$0xff]
    %v442 = vld [vmem:[%s437 + $0x20] sm:$0xff]
    %v443 = vld [vmem:[%s437 + $0x28] sm:$0xff]
    %v444 = vld [vmem:[%s437 + $0x30] sm:$0xff]
    %v445 = vld [vmem:[%s437 + $0x38] sm:$0xff]
    %v446 = vld [vmem:[%s437 + $0x40] sm:$0xff]
    %v447 = vld [vmem:[%s437 + $0x48] sm:$0xff]
    %v448 = vld [vmem:[%s437 + $0x50] sm:$0xff]
    %v449 = vld [vmem:[%s437 + $0x58] sm:$0xff]
    %v450 = vld [vmem:[%s437 + $0x60] sm:$0xff]
    %v451 = vld [vmem:[%s437 + $0x68] sm:$0xff]
    %v452 = vld [vmem:[%s437 + $0x70] sm:$0xff]
    %v453 = vld [vmem:[%s437 + $0x78] sm:$0xff]
    %s454 = scalar_lea.vmem [#allocation8], 256
    %v455 = vld [vmem:[%s454] sm:$0xff]
    %v456 = vld [vmem:[%s454 + $0x8] sm:$0xff]
    %v457 = vld [vmem:[%s454 + $0x10] sm:$0xff]
    %v458 = vld [vmem:[%s454 + $0x18] sm:$0xff]
    %v459 = vld [vmem:[%s454 + $0x20] sm:$0xff]
    %v460 = vld [vmem:[%s454 + $0x28] sm:$0xff]
    %v461 = vld [vmem:[%s454 + $0x30] sm:$0xff]
    %v462 = vld [vmem:[%s454 + $0x38] sm:$0xff]
    %v463 = vld [vmem:[%s454 + $0x40] sm:$0xff]
    %v464 = vld [vmem:[%s454 + $0x48] sm:$0xff]
    %v465 = vld [vmem:[%s454 + $0x50] sm:$0xff]
    %v466 = vld [vmem:[%s454 + $0x58] sm:$0xff]
    %v467 = vld [vmem:[%s454 + $0x60] sm:$0xff]
    %v468 = vld [vmem:[%s454 + $0x68] sm:$0xff]
    %v469 = vld [vmem:[%s454 + $0x70] sm:$0xff]
    %v470 = vld [vmem:[%s454 + $0x78] sm:$0xff]
    %471 = vmatprep.subr.mxu0 0.0
    %472 = vmatpush1.msra.mxu0 %v470
    %473 = vmatprep.subr.mxu0 0.0
    %474 = vmatpush1.msra.mxu0 %v469
    %475 = vmatprep.subr.mxu0 0.0
    %476 = vmatpush1.msra.mxu0 %v468
    %477 = vmatprep.subr.mxu0 0.0
    %478 = vmatpush1.msra.mxu0 %v467
    %479 = vmatprep.subr.mxu0 0.0
    %480 = vmatpush1.msra.mxu0 %v466
    %481 = vmatprep.subr.mxu0 0.0
    %482 = vmatpush1.msra.mxu0 %v465
    %483 = vmatprep.subr.mxu0 0.0
    %484 = vmatpush1.msra.mxu0 %v464
    %485 = vmatprep.subr.mxu0 0.0
    %486 = vmatpush1.msra.mxu0 %v463
    %487 = vmatprep.subr.mxu0 0.0
    %488 = vmatpush1.msra.mxu0 %v462
    %489 = vmatprep.subr.mxu0 0.0
    %490 = vmatpush1.msra.mxu0 %v461
    %491 = vmatprep.subr.mxu0 0.0
    %492 = vmatpush1.msra.mxu0 %v460
    %493 = vmatprep.subr.mxu0 0.0
    %494 = vmatpush1.msra.mxu0 %v459
    %495 = vmatprep.subr.mxu0 0.0
    %496 = vmatpush1.msra.mxu0 %v458
    %497 = vmatprep.subr.mxu0 0.0
    %498 = vmatpush1.msra.mxu0 %v457
    %499 = vmatprep.subr.mxu0 0.0
    %500 = vmatpush1.msra.mxu0 %v456
    %501 = vmatprep.subr.mxu0 0.0
    %502 = vmatpush1.msra.mxu0 %v455
    %503 = vmatprep.subr.mxu0 0.0
    %504 = vmatpush2.msra.mxu0 0.0
    %505 = vmatprep.subr.mxu0 0.0
    %506 = vmatpush2.msra.mxu0 0.0
    %507 = vmatprep.subr.mxu0 0.0
    %508 = vmatpush2.msra.mxu0 0.0
    %509 = vmatprep.subr.mxu0 0.0
    %510 = vmatpush2.msra.mxu0 0.0
    %511 = vmatprep.subr.mxu0 0.0
    %512 = vmatpush2.msra.mxu0 0.0
    %513 = vmatprep.subr.mxu0 0.0
    %514 = vmatpush2.msra.mxu0 0.0
    %515 = vmatprep.subr.mxu0 0.0
    %516 = vmatpush2.msra.mxu0 0.0
    %517 = vmatprep.subr.mxu0 0.0
    %518 = vmatpush2.msra.mxu0 0.0
    %519 = vmatprep.subr.mxu0 0.0
    %520 = vmatpush2.msra.mxu0 0.0
    %521 = vmatprep.subr.mxu0 0.0
    %522 = vmatpush2.msra.mxu0 0.0
    %523 = vmatprep.subr.mxu0 0.0
    %524 = vmatpush2.msra.mxu0 0.0
    %525 = vmatprep.subr.mxu0 0.0
    %526 = vmatpush2.msra.mxu0 0.0
    %527 = vmatprep.subr.mxu0 0.0
    %528 = vmatpush2.msra.mxu0 0.0
    %529 = vmatprep.subr.mxu0 0.0
    %530 = vmatpush2.msra.mxu0 0.0
    %531 = vmatprep.subr.mxu0 0.0
    %532 = vmatpush2.msra.mxu0 0.0
    %533 = vmatprep.subr.mxu0 0.0
    %534 = vmatpush2.msra.mxu0 0.0
    %535 = vmatprep.mubr.f32.mxu0 0.0
    %536 = vmatmul.mubr.f32.gmra.mxu0 %v73
    %v537 = vpop.f32.mrf.mxu0
    %v538 = vadd.f32 0.0, %v537
    %v539 = vpop.f32.mrf.mxu0
    %540 = vdwg.mxu0
    %541 = vmatprep.subr.mxu0 0.0
    %542 = vmatpush1.msra.mxu0 %v453
    %543 = vmatprep.subr.mxu0 0.0
    %544 = vmatpush1.msra.mxu0 %v452
    %545 = vmatprep.subr.mxu0 0.0
    %546 = vmatpush1.msra.mxu0 %v451
    %547 = vmatprep.subr.mxu0 0.0
    %548 = vmatpush1.msra.mxu0 %v450
    %549 = vmatprep.subr.mxu0 0.0
    %550 = vmatpush1.msra.mxu0 %v449
    %551 = vmatprep.subr.mxu0 0.0
    %552 = vmatpush1.msra.mxu0 %v448
    %553 = vmatprep.subr.mxu0 0.0
    %554 = vmatpush1.msra.mxu0 %v447
    %555 = vmatprep.subr.mxu0 0.0
    %556 = vmatpush1.msra.mxu0 %v446
    %557 = vmatprep.subr.mxu0 0.0
    %558 = vmatpush1.msra.mxu0 %v445
    %559 = vmatprep.subr.mxu0 0.0
    %560 = vmatpush1.msra.mxu0 %v444
    %561 = vmatprep.subr.mxu0 0.0
    %562 = vmatpush1.msra.mxu0 %v443
    %563 = vmatprep.subr.mxu0 0.0
    %564 = vmatpush1.msra.mxu0 %v442
    %565 = vmatprep.subr.mxu0 0.0
    %566 = vmatpush1.msra.mxu0 %v441
    %567 = vmatprep.subr.mxu0 0.0
    %568 = vmatpush1.msra.mxu0 %v440
    %569 = vmatprep.subr.mxu0 0.0
    %570 = vmatpush1.msra.mxu0 %v439
    %571 = vmatprep.subr.mxu0 0.0
    %572 = vmatpush1.msra.mxu0 %v438
    %573 = vmatprep.subr.mxu0 0.0
    %574 = vmatpush2.msra.mxu0 0.0
    %575 = vmatprep.subr.mxu0 0.0
    %576 = vmatpush2.msra.mxu0 0.0
    %577 = vmatprep.subr.mxu0 0.0
    %578 = vmatpush2.msra.mxu0 0.0
    %579 = vmatprep.subr.mxu0 0.0
    %580 = vmatpush2.msra.mxu0 0.0
    %581 = vmatprep.subr.mxu0 0.0
    %582 = vmatpush2.msra.mxu0 0.0
    %583 = vmatprep.subr.mxu0 0.0
    %584 = vmatpush2.msra.mxu0 0.0
    %585 = vmatprep.subr.mxu0 0.0
    %586 = vmatpush2.msra.mxu0 0.0
    %587 = vmatprep.subr.mxu0 0.0
    %588 = vmatpush2.msra.mxu0 0.0
    %589 = vmatprep.subr.mxu0 0.0
    %590 = vmatpush2.msra.mxu0 0.0
    %591 = vmatprep.subr.mxu0 0.0
    %592 = vmatpush2.msra.mxu0 0.0
    %593 = vmatprep.subr.mxu0 0.0
    %594 = vmatpush2.msra.mxu0 0.0
    %595 = vmatprep.subr.mxu0 0.0
    %596 = vmatpush2.msra.mxu0 0.0
    %597 = vmatprep.subr.mxu0 0.0
    %598 = vmatpush2.msra.mxu0 0.0
    %599 = vmatprep.subr.mxu0 0.0
    %600 = vmatpush2.msra.mxu0 0.0
    %601 = vmatprep.subr.mxu0 0.0
    %602 = vmatpush2.msra.mxu0 0.0
    %603 = vmatprep.subr.mxu0 0.0
    %604 = vmatpush2.msra.mxu0 0.0
    %605 = vmatprep.mubr.f32.mxu0 0.0
    %606 = vmatmul.mubr.f32.gmra.mxu0 %v72
    %v607 = vpop.f32.mrf.mxu0
    %v608 = vadd.f32 %v538, %v607
    %v609 = vpop.f32.mrf.mxu0
    %610 = vdwg.mxu0
    %s611 = scalar_lea.vmem %s4, 2
    %v612 = vld [vmem:[%s611] sm:$0x1]
    %v614 = vlaneseq
    %v615 = vshrl.u32 %v614, 7
    %v616 = vsub.s32 0, %v615
    %v617 = vrot.slane %v612, %v616
    %v619 = vadd.f32 %v608, %v617
    %v620 = vmul.f32 %v253, %v436
    %v621 = vmul.f32 %v73, %v619
    %v622 = vadd.f32 %v620, %v621
    %623 = vst [vmem:[#allocation10] sm:$0xff] %v622
    // Predicated region
    $region38: #{tpu_custom_call.1} parent=1 // pred_check
      _
    $region39: #{tpu_custom_call.1} parent=1 // pred_check_branch
      %625 = sbr.rel (0) target = $region41
    $region40: #{tpu_custom_call.1} parent=1 // pred_region
      %s627 = ssub.s32 128, 128
      %628 = vsyncadd [#allocation4], %s627
      %s630 = sshll.u32 [#allocation10], 4
      %s631 = int_to_ptr.vmem [resolvable:$true] %s630
      %633 = dma.vmem_to_hbm [thread:$0]  %s631, 128, %s5, [#allocation4]
    $region41: #{tpu_custom_call.1} parent=1 // pred_fallthru
      _
    // Predicated region
    $region42: #{tpu_custom_call.1} parent=1 // pred_check
      _
    $region43: #{tpu_custom_call.1} parent=1 // pred_check_branch
      %635 = sbr.rel (0) target = $region45
    $region44: #{tpu_custom_call.1} parent=1 // pred_region
      %636 = dma.done [#allocation4], 128
    $region45: #{tpu_custom_call.1} parent=1 // pred_fallthru
      _
    %637 = vsyncpa [#allocation3], 1
    %638 = vsyncpa [#allocation6], 1
    %639 = vsyncpa [#allocation9], 1
    %640 = vsyncpa [#allocation4], 1

// kernel: tpu_custom_call.1
$region0: #{tpu_custom_call.1}
  #allocation0 [shape = 'u32[]', space=smem, size = 0x4, offset = 0x4, fixed_abs, tag = 'smem constant byte address 0x4 - core index']
  #allocation1 [shape = 'u32[144,128]{1,0:T(1,128)}', space=vmem, size = 0x12000, scoped, tag = 'internal scratch']
  %s0 = inlined_call_operand.hbm [shape: f32[8,128], index: 0, kind: input, shape index: {}]
  %s1 = inlined_call_operand.hbm [shape: f32[8,128], index: 1, kind: input, shape index: {}]
  %s2 = inlined_call_operand.hbm [shape: f32[3,128,128], index: 2, kind: input, shape index: {}]
  %s3 = inlined_call_operand.hbm [shape: f32[3,128,128], index: 3, kind: input, shape index: {}]
  %s4 = inlined_call_operand.vmem [shape: f32[3,1,128], index: 4, kind: input, shape index: {}]
  %s5 = inlined_call_operand.hbm [shape: f32[8,128], index: 5, kind: output, shape index: {}]
  %s6 = sld [smem:[#allocation0]]
  $region46: #{tpu_custom_call.1} parent=0
    _
  %s8 = ssub.s32 1, %s6
  %s9 = scalar_select 0, %s8, %s6
  $region1: #{tpu_custom_call.1} parent=0
    #allocation2 [shape = 'u8[4096]{0}', space=vmem, size = 0x1000, scoped, tag = 'input window, operand 0, single buffered']
    #allocation3 [shape = 's32[1]{0}', space=sflag, size = 0x4, scoped, tag = 'scoped memory for tpu_custom_call.1']
    #allocation4 [shape = 's32[1]{0}', space=sflag, size = 0x4, scoped, tag = 'scoped memory for tpu_custom_call.1']
    #allocation5 [shape = 'u8[4096]{0}', space=vmem, size = 0x1000, scoped, tag = 'input window, operand 1, single buffered']
    #allocation6 [shape = 's32[1]{0}', space=sflag, size = 0x4, scoped, tag = 'scoped memory for tpu_custom_call.1']
    #allocation7 [shape = 'u8[196608]{0}', space=vmem, size = 0x30000, scoped, tag = 'input window, operand 2, single buffered']
    #allocation8 [shape = 'u8[196608]{0}', space=vmem, size = 0x30000, scoped, tag = 'input window, operand 3, single buffered']
    #allocation9 [shape = 's32[1]{0}', space=sflag, size = 0x4, scoped, tag = 'scoped memory for tpu_custom_call.1']
    #allocation10 [shape = 'u8[4096]{0}', space=vmem, size = 0x1000, scoped, tag = 'output window, operand 0, single buffered']
    %10 = vsyncpa [#allocation3], 0
    %11 = vsyncpa [#allocation6], 0
    %12 = vsyncpa [#allocation9], 0
    %13 = vsyncpa [#allocation4], 0
    // Predicated region
    $region2: #{tpu_custom_call.1} parent=1 // pred_check
      _
    $region3: #{tpu_custom_call.1} parent=1 // pred_check_branch
      %15 = sbr.rel (0) target = $region5
    $region4: #{tpu_custom_call.1} parent=1 // pred_region
      %s17 = ssub.s32 128, 128
      %18 = vsyncadd [#allocation3], %s17
      %s20 = sshll.u32 [#allocation2], 4
      %s21 = int_to_ptr.vmem [resolvable:$true] %s20
      %23 = dma.hbm_to_vmem [thread:$0]  %s0, 128, %s21, [#allocation3]
    $region5: #{tpu_custom_call.1} parent=1 // pred_fallthru
      _
    // Predicated region
    $region6: #{tpu_custom_call.1} parent=1 // pred_check
      _
    $region7: #{tpu_custom_call.1} parent=1 // pred_check_branch
      %25 = sbr.rel (0) target = $region9
    $region8: #{tpu_custom_call.1} parent=1 // pred_region
      %s27 = ssub.s32 128, 128
      %28 = vsyncadd [#allocation6], %s27
      %s30 = sshll.u32 [#allocation5], 4
      %s31 = int_to_ptr.vmem [resolvable:$true] %s30
      %33 = dma.hbm_to_vmem [thread:$0]  %s1, 128, %s31, [#allocation6]
    $region9: #{tpu_custom_call.1} parent=1 // pred_fallthru
      _
    // Predicated region
    $region10: #{tpu_custom_call.1} parent=1 // pred_check
      _
    $region11: #{tpu_custom_call.1} parent=1 // pred_check_branch
      %35 = sbr.rel (0) target = $region13
    $region12: #{tpu_custom_call.1} parent=1 // pred_region
      %s37 = ssub.s32 6144, 6144
      %38 = vsyncadd [#allocation6], %s37
      %s39 = sshll.u32 [#allocation7], 4
      %s40 = int_to_ptr.vmem [resolvable:$true] %s39
      %45 = dma.hbm_to_vmem [thread:$0]  %s2, 6144, %s40, [#allocation6], 128, 128, 8
    $region13: #{tpu_custom_call.1} parent=1 // pred_fallthru
      _
    // Predicated region
    $region14: #{tpu_custom_call.1} parent=1 // pred_check
      _
    $region15: #{tpu_custom_call.1} parent=1 // pred_check_branch
      %47 = sbr.rel (0) target = $region17
    $region16: #{tpu_custom_call.1} parent=1 // pred_region
      %s49 = ssub.s32 6144, 6144
      %50 = vsyncadd [#allocation9], %s49
      %s51 = sshll.u32 [#allocation8], 4
      %s52 = int_to_ptr.vmem [resolvable:$true] %s51
      %57 = dma.hbm_to_vmem [thread:$0]  %s3, 6144, %s52, [#allocation9], 128, 128, 8
    $region17: #{tpu_custom_call.1} parent=1 // pred_fallthru
      _
    // Predicated region
    $region18: #{tpu_custom_call.1} parent=1 // pred_check
      _
    $region19: #{tpu_custom_call.1} parent=1 // pred_check_branch
      %59 = sbr.rel (0) target = $region21
    $region20: #{tpu_custom_call.1} parent=1 // pred_region
      _
    $region21: #{tpu_custom_call.1} parent=1 // pred_fallthru
      _
    // Predicated region
    $region22: #{tpu_custom_call.1} parent=1 // pred_check
      _
    $region23: #{tpu_custom_call.1} parent=1 // pred_check_branch
      %61 = sbr.rel (0) target = $region25
    $region24: #{tpu_custom_call.1} parent=1 // pred_region
      %62 = dma.done [#allocation3], 128
    $region25: #{tpu_custom_call.1} parent=1 // pred_fallthru
      _
    // Predicated region
    $region26: #{tpu_custom_call.1} parent=1 // pred_check
      _
    $region27: #{tpu_custom_call.1} parent=1 // pred_check_branch
      %64 = sbr.rel (0) target = $region29
    $region28: #{tpu_custom_call.1} parent=1 // pred_region
      %65 = dma.done [#allocation6], 128
    $region29: #{tpu_custom_call.1} parent=1 // pred_fallthru
      _
    // Predicated region
    $region30: #{tpu_custom_call.1} parent=1 // pred_check
      _
    $region31: #{tpu_custom_call.1} parent=1 // pred_check_branch
      %67 = sbr.rel (0) target = $region33
    $region32: #{tpu_custom_call.1} parent=1 // pred_region
      %68 = dma.done [#allocation6], 6144
    $region33: #{tpu_custom_call.1} parent=1 // pred_fallthru
      _
    // Predicated region
    $region34: #{tpu_custom_call.1} parent=1 // pred_check
      _
    $region35: #{tpu_custom_call.1} parent=1 // pred_check_branch
      %70 = sbr.rel (0) target = $region37
    $region36: #{tpu_custom_call.1} parent=1 // pred_region
      %71 = dma.done [#allocation9], 6144
    $region37: #{tpu_custom_call.1} parent=1 // pred_fallthru
      _
    %v72 = vld [vmem:[#allocation2] sm:$0xff]
    %v73 = vld [vmem:[#allocation5] sm:$0xff]
    %v74 = vld [vmem:[#allocation7] sm:$0xff]
    %v75 = vld [vmem:[#allocation7 + $0x8] sm:$0xff]
    %v76 = vld [vmem:[#allocation7 + $0x10] sm:$0xff]
    %v77 = vld [vmem:[#allocation7 + $0x18] sm:$0xff]
    %v78 = vld [vmem:[#allocation7 + $0x20] sm:$0xff]
    %v79 = vld [vmem:[#allocation7 + $0x28] sm:$0xff]
    %v80 = vld [vmem:[#allocation7 + $0x30] sm:$0xff]
    %v81 = vld [vmem:[#allocation7 + $0x38] sm:$0xff]
    %v82 = vld [vmem:[#allocation7 + $0x40] sm:$0xff]
    %v83 = vld [vmem:[#allocation7 + $0x48] sm:$0xff]
    %v84 = vld [vmem:[#allocation7 + $0x50] sm:$0xff]
    %v85 = vld [vmem:[#allocation7 + $0x58] sm:$0xff]
    %v86 = vld [vmem:[#allocation7 + $0x60] sm:$0xff]
    %v87 = vld [vmem:[#allocation7 + $0x68] sm:$0xff]
    %v88 = vld [vmem:[#allocation7 + $0x70] sm:$0xff]
    %v89 = vld [vmem:[#allocation7 + $0x78] sm:$0xff]
    %v90 = vld [vmem:[#allocation8] sm:$0xff]
    %v91 = vld [vmem:[#allocation8 + $0x8] sm:$0xff]
    %v92 = vld [vmem:[#allocation8 + $0x10] sm:$0xff]
    %v93 = vld [vmem:[#allocation8 + $0x18] sm:$0xff]
    %v94 = vld [vmem:[#allocation8 + $0x20] sm:$0xff]
    %v95 = vld [vmem:[#allocation8 + $0x28] sm:$0xff]
    %v96 = vld [vmem:[#allocation8 + $0x30] sm:$0xff]
    %v97 = vld [vmem:[#allocation8 + $0x38] sm:$0xff]
    %v98 = vld [vmem:[#allocation8 + $0x40] sm:$0xff]
    %v99 = vld [vmem:[#allocation8 + $0x48] sm:$0xff]
    %v100 = vld [vmem:[#allocation8 + $0x50] sm:$0xff]
    %v101 = vld [vmem:[#allocation8 + $0x58] sm:$0xff]
    %v102 = vld [vmem:[#allocation8 + $0x60] sm:$0xff]
    %v103 = vld [vmem:[#allocation8 + $0x68] sm:$0xff]
    %v104 = vld [vmem:[#allocation8 + $0x70] sm:$0xff]
    %v105 = vld [vmem:[#allocation8 + $0x78] sm:$0xff]
    %106 = vmatprep.subr.mxu0 0.0
    %107 = vmatpush1.msra.mxu0 %v105
    %108 = vmatprep.subr.mxu0 0.0
    %109 = vmatpush1.msra.mxu0 %v104
    %110 = vmatprep.subr.mxu0 0.0
    %111 = vmatpush1.msra.mxu0 %v103
    %112 = vmatprep.subr.mxu0 0.0
    %113 = vmatpush1.msra.mxu0 %v102
    %114 = vmatprep.subr.mxu0 0.0
    %115 = vmatpush1.msra.mxu0 %v101
    %116 = vmatprep.subr.mxu0 0.0
    %117 = vmatpush1.msra.mxu0 %v100
    %118 = vmatprep.subr.mxu0 0.0
    %119 = vmatpush1.msra.mxu0 %v99
    %120 = vmatprep.subr.mxu0 0.0
    %121 = vmatpush1.msra.mxu0 %v98
    %122 = vmatprep.subr.mxu0 0.0
    %123 = vmatpush1.msra.mxu0 %v97
    %124 = vmatprep.subr.mxu0 0.0
    %125 = vmatpush1.msra.mxu0 %v96
    %126 = vmatprep.subr.mxu0 0.0
    %127 = vmatpush1.msra.mxu0 %v95
    %128 = vmatprep.subr.mxu0 0.0
    %129 = vmatpush1.msra.mxu0 %v94
    %130 = vmatprep.subr.mxu0 0.0
    %131 = vmatpush1.msra.mxu0 %v93
    %132 = vmatprep.subr.mxu0 0.0
    %133 = vmatpush1.msra.mxu0 %v92
    %134 = vmatprep.subr.mxu0 0.0
    %135 = vmatpush1.msra.mxu0 %v91
    %136 = vmatprep.subr.mxu0 0.0
    %137 = vmatpush1.msra.mxu0 %v90
    %138 = vmatprep.subr.mxu0 0.0
    %139 = vmatpush2.msra.mxu0 0.0
    %140 = vmatprep.subr.mxu0 0.0
    %141 = vmatpush2.msra.mxu0 0.0
    %142 = vmatprep.subr.mxu0 0.0
    %143 = vmatpush2.msra.mxu0 0.0
    %144 = vmatprep.subr.mxu0 0.0
    %145 = vmatpush2.msra.mxu0 0.0
    %146 = vmatprep.subr.mxu0 0.0
    %147 = vmatpush2.msra.mxu0 0.0
    %148 = vmatprep.subr.mxu0 0.0
    %149 = vmatpush2.msra.mxu0 0.0
    %150 = vmatprep.subr.mxu0 0.0
    %151 = vmatpush2.msra.mxu0 0.0
    %152 = vmatprep.subr.mxu0 0.0
    %153 = vmatpush2.msra.mxu0 0.0
    %154 = vmatprep.subr.mxu0 0.0
    %155 = vmatpush2.msra.mxu0 0.0
    %156 = vmatprep.subr.mxu0 0.0
    %157 = vmatpush2.msra.mxu0 0.0
    %158 = vmatprep.subr.mxu0 0.0
    %159 = vmatpush2.msra.mxu0 0.0
    %160 = vmatprep.subr.mxu0 0.0
    %161 = vmatpush2.msra.mxu0 0.0
    %162 = vmatprep.subr.mxu0 0.0
    %163 = vmatpush2.msra.mxu0 0.0
    %164 = vmatprep.subr.mxu0 0.0
    %165 = vmatpush2.msra.mxu0 0.0
    %166 = vmatprep.subr.mxu0 0.0
    %167 = vmatpush2.msra.mxu0 0.0
    %168 = vmatprep.subr.mxu0 0.0
    %169 = vmatpush2.msra.mxu0 0.0
    %170 = vmatprep.mubr.f32.mxu0 0.0
    %171 = vmatmul.mubr.f32.gmra.mxu0 %v73
    %v172 = vpop.f32.mrf.mxu0
    %v173 = vadd.f32 0.0, %v172
    %v174 = vpop.f32.mrf.mxu0
    %175 = vdwg.mxu0
    %176 = vmatprep.subr.mxu0 0.0
    %177 = vmatpush1.msra.mxu0 %v89
    %178 = vmatprep.subr.mxu0 0.0
    %179 = vmatpush1.msra.mxu0 %v88
    %180 = vmatprep.subr.mxu0 0.0
    %181 = vmatpush1.msra.mxu0 %v87
    %182 = vmatprep.subr.mxu0 0.0
    %183 = vmatpush1.msra.mxu0 %v86
    %184 = vmatprep.subr.mxu0 0.0
    %185 = vmatpush1.msra.mxu0 %v85
    %186 = vmatprep.subr.mxu0 0.0
    %187 = vmatpush1.msra.mxu0 %v84
    %188 = vmatprep.subr.mxu0 0.0
    %189 = vmatpush1.msra.mxu0 %v83
    %190 = vmatprep.subr.mxu0 0.0
    %191 = vmatpush1.msra.mxu0 %v82
    %192 = vmatprep.subr.mxu0 0.0
    %193 = vmatpush1.msra.mxu0 %v81
    %194 = vmatprep.subr.mxu0 0.0
    %195 = vmatpush1.msra.mxu0 %v80
    %196 = vmatprep.subr.mxu0 0.0
    %197 = vmatpush1.msra.mxu0 %v79
    %198 = vmatprep.subr.mxu0 0.0
    %199 = vmatpush1.msra.mxu0 %v78
    %200 = vmatprep.subr.mxu0 0.0
    %201 = vmatpush1.msra.mxu0 %v77
    %202 = vmatprep.subr.mxu0 0.0
    %203 = vmatpush1.msra.mxu0 %v76
    %204 = vmatprep.subr.mxu0 0.0
    %205 = vmatpush1.msra.mxu0 %v75
    %206 = vmatprep.subr.mxu0 0.0
    %207 = vmatpush1.msra.mxu0 %v74
    %208 = vmatprep.subr.mxu0 0.0
    %209 = vmatpush2.msra.mxu0 0.0
    %210 = vmatprep.subr.mxu0 0.0
    %211 = vmatpush2.msra.mxu0 0.0
    %212 = vmatprep.subr.mxu0 0.0
    %213 = vmatpush2.msra.mxu0 0.0
    %214 = vmatprep.subr.mxu0 0.0
    %215 = vmatpush2.msra.mxu0 0.0
    %216 = vmatprep.subr.mxu0 0.0
    %217 = vmatpush2.msra.mxu0 0.0
    %218 = vmatprep.subr.mxu0 0.0
    %219 = vmatpush2.msra.mxu0 0.0
    %220 = vmatprep.subr.mxu0 0.0
    %221 = vmatpush2.msra.mxu0 0.0
    %222 = vmatprep.subr.mxu0 0.0
    %223 = vmatpush2.msra.mxu0 0.0
    %224 = vmatprep.subr.mxu0 0.0
    %225 = vmatpush2.msra.mxu0 0.0
    %226 = vmatprep.subr.mxu0 0.0
    %227 = vmatpush2.msra.mxu0 0.0
    %228 = vmatprep.subr.mxu0 0.0
    %229 = vmatpush2.msra.mxu0 0.0
    %230 = vmatprep.subr.mxu0 0.0
    %231 = vmatpush2.msra.mxu0 0.0
    %232 = vmatprep.subr.mxu0 0.0
    %233 = vmatpush2.msra.mxu0 0.0
    %234 = vmatprep.subr.mxu0 0.0
    %235 = vmatpush2.msra.mxu0 0.0
    %236 = vmatprep.subr.mxu0 0.0
    %237 = vmatpush2.msra.mxu0 0.0
    %238 = vmatprep.subr.mxu0 0.0
    %239 = vmatpush2.msra.mxu0 0.0
    %240 = vmatprep.mubr.f32.mxu0 0.0
    %241 = vmatmul.mubr.f32.gmra.mxu0 %v72
    %v242 = vpop.f32.mrf.mxu0
    %v243 = vadd.f32 %v173, %v242
    %v244 = vpop.f32.mrf.mxu0
    %245 = vdwg.mxu0
    %v246 = vld [vmem:[%s4] sm:$0x1]
    %v248 = vlaneseq
    %v249 = vshrl.u32 %v248, 7
    %v250 = vsub.s32 0, %v249
    %v251 = vrot.slane %v246, %v250
    %v253 = vadd.f32 %v243, %v251
    %s254 = scalar_lea.vmem [#allocation7], 128
    %v255 = vld [vmem:[%s254] sm:$0xff]
    %v256 = vld [vmem:[%s254 + $0x8] sm:$0xff]
    %v257 = vld [vmem:[%s254 + $0x10] sm:$0xff]
    %v258 = vld [vmem:[%s254 + $0x18] sm:$0xff]
    %v259 = vld [vmem:[%s254 + $0x20] sm:$0xff]
    %v260 = vld [vmem:[%s254 + $0x28] sm:$0xff]
    %v261 = vld [vmem:[%s254 + $0x30] sm:$0xff]
    %v262 = vld [vmem:[%s254 + $0x38] sm:$0xff]
    %v263 = vld [vmem:[%s254 + $0x40] sm:$0xff]
    %v264 = vld [vmem:[%s254 + $0x48] sm:$0xff]
    %v265 = vld [vmem:[%s254 + $0x50] sm:$0xff]
    %v266 = vld [vmem:[%s254 + $0x58] sm:$0xff]
    %v267 = vld [vmem:[%s254 + $0x60] sm:$0xff]
    %v268 = vld [vmem:[%s254 + $0x68] sm:$0xff]
    %v269 = vld [vmem:[%s254 + $0x70] sm:$0xff]
    %v270 = vld [vmem:[%s254 + $0x78] sm:$0xff]
    %s271 = scalar_lea.vmem [#allocation8], 128
    %v272 = vld [vmem:[%s271] sm:$0xff]
    %v273 = vld [vmem:[%s271 + $0x8] sm:$0xff]
    %v274 = vld [vmem:[%s271 + $0x10] sm:$0xff]
    %v275 = vld [vmem:[%s271 + $0x18] sm:$0xff]
    %v276 = vld [vmem:[%s271 + $0x20] sm:$0xff]
    %v277 = vld [vmem:[%s271 + $0x28] sm:$0xff]
    %v278 = vld [vmem:[%s271 + $0x30] sm:$0xff]
    %v279 = vld [vmem:[%s271 + $0x38] sm:$0xff]
    %v280 = vld [vmem:[%s271 + $0x40] sm:$0xff]
    %v281 = vld [vmem:[%s271 + $0x48] sm:$0xff]
    %v282 = vld [vmem:[%s271 + $0x50] sm:$0xff]
    %v283 = vld [vmem:[%s271 + $0x58] sm:$0xff]
    %v284 = vld [vmem:[%s271 + $0x60] sm:$0xff]
    %v285 = vld [vmem:[%s271 + $0x68] sm:$0xff]
    %v286 = vld [vmem:[%s271 + $0x70] sm:$0xff]
    %v287 = vld [vmem:[%s271 + $0x78] sm:$0xff]
    %288 = vmatprep.subr.mxu0 0.0
    %289 = vmatpush1.msra.mxu0 %v287
    %290 = vmatprep.subr.mxu0 0.0
    %291 = vmatpush1.msra.mxu0 %v286
    %292 = vmatprep.subr.mxu0 0.0
    %293 = vmatpush1.msra.mxu0 %v285
    %294 = vmatprep.subr.mxu0 0.0
    %295 = vmatpush1.msra.mxu0 %v284
    %296 = vmatprep.subr.mxu0 0.0
    %297 = vmatpush1.msra.mxu0 %v283
    %298 = vmatprep.subr.mxu0 0.0
    %299 = vmatpush1.msra.mxu0 %v282
    %300 = vmatprep.subr.mxu0 0.0
    %301 = vmatpush1.msra.mxu0 %v281
    %302 = vmatprep.subr.mxu0 0.0
    %303 = vmatpush1.msra.mxu0 %v280
    %304 = vmatprep.subr.mxu0 0.0
    %305 = vmatpush1.msra.mxu0 %v279
    %306 = vmatprep.subr.mxu0 0.0
    %307 = vmatpush1.msra.mxu0 %v278
    %308 = vmatprep.subr.mxu0 0.0
    %309 = vmatpush1.msra.mxu0 %v277
    %310 = vmatprep.subr.mxu0 0.0
    %311 = vmatpush1.msra.mxu0 %v276
    %312 = vmatprep.subr.mxu0 0.0
    %313 = vmatpush1.msra.mxu0 %v275
    %314 = vmatprep.subr.mxu0 0.0
    %315 = vmatpush1.msra.mxu0 %v274
    %316 = vmatprep.subr.mxu0 0.0
    %317 = vmatpush1.msra.mxu0 %v273
    %318 = vmatprep.subr.mxu0 0.0
    %319 = vmatpush1.msra.mxu0 %v272
    %320 = vmatprep.subr.mxu0 0.0
    %321 = vmatpush2.msra.mxu0 0.0
    %322 = vmatprep.subr.mxu0 0.0
    %323 = vmatpush2.msra.mxu0 0.0
    %324 = vmatprep.subr.mxu0 0.0
    %325 = vmatpush2.msra.mxu0 0.0
    %326 = vmatprep.subr.mxu0 0.0
    %327 = vmatpush2.msra.mxu0 0.0
    %328 = vmatprep.subr.mxu0 0.0
    %329 = vmatpush2.msra.mxu0 0.0
    %330 = vmatprep.subr.mxu0 0.0
    %331 = vmatpush2.msra.mxu0 0.0
    %332 = vmatprep.subr.mxu0 0.0
    %333 = vmatpush2.msra.mxu0 0.0
    %334 = vmatprep.subr.mxu0 0.0
    %335 = vmatpush2.msra.mxu0 0.0
    %336 = vmatprep.subr.mxu0 0.0
    %337 = vmatpush2.msra.mxu0 0.0
    %338 = vmatprep.subr.mxu0 0.0
    %339 = vmatpush2.msra.mxu0 0.0
    %340 = vmatprep.subr.mxu0 0.0
    %341 = vmatpush2.msra.mxu0 0.0
    %342 = vmatprep.subr.mxu0 0.0
    %343 = vmatpush2.msra.mxu0 0.0
    %344 = vmatprep.subr.mxu0 0.0
    %345 = vmatpush2.msra.mxu0 0.0
    %346 = vmatprep.subr.mxu0 0.0
    %347 = vmatpush2.msra.mxu0 0.0
    %348 = vmatprep.subr.mxu0 0.0
    %349 = vmatpush2.msra.mxu0 0.0
    %350 = vmatprep.subr.mxu0 0.0
    %351 = vmatpush2.msra.mxu0 0.0
    %352 = vmatprep.mubr.f32.mxu0 0.0
    %353 = vmatmul.mubr.f32.gmra.mxu0 %v73
    %v354 = vpop.f32.mrf.mxu0
    %v355 = vadd.f32 0.0, %v354
    %v356 = vpop.f32.mrf.mxu0
    %357 = vdwg.mxu0
    %358 = vmatprep.subr.mxu0 0.0
    %359 = vmatpush1.msra.mxu0 %v270
    %360 = vmatprep.subr.mxu0 0.0
    %361 = vmatpush1.msra.mxu0 %v269
    %362 = vmatprep.subr.mxu0 0.0
    %363 = vmatpush1.msra.mxu0 %v268
    %364 = vmatprep.subr.mxu0 0.0
    %365 = vmatpush1.msra.mxu0 %v267
    %366 = vmatprep.subr.mxu0 0.0
    %367 = vmatpush1.msra.mxu0 %v266
    %368 = vmatprep.subr.mxu0 0.0
    %369 = vmatpush1.msra.mxu0 %v265
    %370 = vmatprep.subr.mxu0 0.0
    %371 = vmatpush1.msra.mxu0 %v264
    %372 = vmatprep.subr.mxu0 0.0
    %373 = vmatpush1.msra.mxu0 %v263
    %374 = vmatprep.subr.mxu0 0.0
    %375 = vmatpush1.msra.mxu0 %v262
    %376 = vmatprep.subr.mxu0 0.0
    %377 = vmatpush1.msra.mxu0 %v261
    %378 = vmatprep.subr.mxu0 0.0
    %379 = vmatpush1.msra.mxu0 %v260
    %380 = vmatprep.subr.mxu0 0.0
    %381 = vmatpush1.msra.mxu0 %v259
    %382 = vmatprep.subr.mxu0 0.0
    %383 = vmatpush1.msra.mxu0 %v258
    %384 = vmatprep.subr.mxu0 0.0
    %385 = vmatpush1.msra.mxu0 %v257
    %386 = vmatprep.subr.mxu0 0.0
    %387 = vmatpush1.msra.mxu0 %v256
    %388 = vmatprep.subr.mxu0 0.0
    %389 = vmatpush1.msra.mxu0 %v255
    %390 = vmatprep.subr.mxu0 0.0
    %391 = vmatpush2.msra.mxu0 0.0
    %392 = vmatprep.subr.mxu0 0.0
    %393 = vmatpush2.msra.mxu0 0.0
    %394 = vmatprep.subr.mxu0 0.0
    %395 = vmatpush2.msra.mxu0 0.0
    %396 = vmatprep.subr.mxu0 0.0
    %397 = vmatpush2.msra.mxu0 0.0
    %398 = vmatprep.subr.mxu0 0.0
    %399 = vmatpush2.msra.mxu0 0.0
    %400 = vmatprep.subr.mxu0 0.0
    %401 = vmatpush2.msra.mxu0 0.0
    %402 = vmatprep.subr.mxu0 0.0
    %403 = vmatpush2.msra.mxu0 0.0
    %404 = vmatprep.subr.mxu0 0.0
    %405 = vmatpush2.msra.mxu0 0.0
    %406 = vmatprep.subr.mxu0 0.0
    %407 = vmatpush2.msra.mxu0 0.0
    %408 = vmatprep.subr.mxu0 0.0
    %409 = vmatpush2.msra.mxu0 0.0
    %410 = vmatprep.subr.mxu0 0.0
    %411 = vmatpush2.msra.mxu0 0.0
    %412 = vmatprep.subr.mxu0 0.0
    %413 = vmatpush2.msra.mxu0 0.0
    %414 = vmatprep.subr.mxu0 0.0
    %415 = vmatpush2.msra.mxu0 0.0
    %416 = vmatprep.subr.mxu0 0.0
    %417 = vmatpush2.msra.mxu0 0.0
    %418 = vmatprep.subr.mxu0 0.0
    %419 = vmatpush2.msra.mxu0 0.0
    %420 = vmatprep.subr.mxu0 0.0
    %421 = vmatpush2.msra.mxu0 0.0
    %422 = vmatprep.mubr.f32.mxu0 0.0
    %423 = vmatmul.mubr.f32.gmra.mxu0 %v72
    %v424 = vpop.f32.mrf.mxu0
    %v425 = vadd.f32 %v355, %v424
    %v426 = vpop.f32.mrf.mxu0
    %427 = vdwg.mxu0
    %s428 = scalar_lea.vmem %s4, 1
    %v429 = vld [vmem:[%s428] sm:$0x1]
    %v431 = vlaneseq
    %v432 = vshrl.u32 %v431, 7
    %v433 = vsub.s32 0, %v432
    %v434 = vrot.slane %v429, %v433
    %v436 = vadd.f32 %v425, %v434
    %s437 = scalar_lea.vmem [#allocation7], 256
    %v438 = vld [vmem:[%s437] sm:$0xff]
    %v439 = vld [vmem:[%s437 + $0x8] sm:$0xff]
    %v440 = vld [vmem:[%s437 + $0x10] sm:$0xff]
    %v441 = vld [vmem:[%s437 + $0x18] sm:$0xff]
    %v442 = vld [vmem:[%s437 + $0x20] sm:$0xff]
    %v443 = vld [vmem:[%s437 + $0x28] sm:$0xff]
    %v444 = vld [vmem:[%s437 + $0x30] sm:$0xff]
    %v445 = vld [vmem:[%s437 + $0x38] sm:$0xff]
    %v446 = vld [vmem:[%s437 + $0x40] sm:$0xff]
    %v447 = vld [vmem:[%s437 + $0x48] sm:$0xff]
    %v448 = vld [vmem:[%s437 + $0x50] sm:$0xff]
    %v449 = vld [vmem:[%s437 + $0x58] sm:$0xff]
    %v450 = vld [vmem:[%s437 + $0x60] sm:$0xff]
    %v451 = vld [vmem:[%s437 + $0x68] sm:$0xff]
    %v452 = vld [vmem:[%s437 + $0x70] sm:$0xff]
    %v453 = vld [vmem:[%s437 + $0x78] sm:$0xff]
    %s454 = scalar_lea.vmem [#allocation8], 256
    %v455 = vld [vmem:[%s454] sm:$0xff]
    %v456 = vld [vmem:[%s454 + $0x8] sm:$0xff]
    %v457 = vld [vmem:[%s454 + $0x10] sm:$0xff]
    %v458 = vld [vmem:[%s454 + $0x18] sm:$0xff]
    %v459 = vld [vmem:[%s454 + $0x20] sm:$0xff]
    %v460 = vld [vmem:[%s454 + $0x28] sm:$0xff]
    %v461 = vld [vmem:[%s454 + $0x30] sm:$0xff]
    %v462 = vld [vmem:[%s454 + $0x38] sm:$0xff]
    %v463 = vld [vmem:[%s454 + $0x40] sm:$0xff]
    %v464 = vld [vmem:[%s454 + $0x48] sm:$0xff]
    %v465 = vld [vmem:[%s454 + $0x50] sm:$0xff]
    %v466 = vld [vmem:[%s454 + $0x58] sm:$0xff]
    %v467 = vld [vmem:[%s454 + $0x60] sm:$0xff]
    %v468 = vld [vmem:[%s454 + $0x68] sm:$0xff]
    %v469 = vld [vmem:[%s454 + $0x70] sm:$0xff]
    %v470 = vld [vmem:[%s454 + $0x78] sm:$0xff]
    %471 = vmatprep.subr.mxu0 0.0
    %472 = vmatpush1.msra.mxu0 %v470
    %473 = vmatprep.subr.mxu0 0.0
    %474 = vmatpush1.msra.mxu0 %v469
    %475 = vmatprep.subr.mxu0 0.0
    %476 = vmatpush1.msra.mxu0 %v468
    %477 = vmatprep.subr.mxu0 0.0
    %478 = vmatpush1.msra.mxu0 %v467
    %479 = vmatprep.subr.mxu0 0.0
    %480 = vmatpush1.msra.mxu0 %v466
    %481 = vmatprep.subr.mxu0 0.0
    %482 = vmatpush1.msra.mxu0 %v465
    %483 = vmatprep.subr.mxu0 0.0
    %484 = vmatpush1.msra.mxu0 %v464
    %485 = vmatprep.subr.mxu0 0.0
    %486 = vmatpush1.msra.mxu0 %v463
    %487 = vmatprep.subr.mxu0 0.0
    %488 = vmatpush1.msra.mxu0 %v462
    %489 = vmatprep.subr.mxu0 0.0
    %490 = vmatpush1.msra.mxu0 %v461
    %491 = vmatprep.subr.mxu0 0.0
    %492 = vmatpush1.msra.mxu0 %v460
    %493 = vmatprep.subr.mxu0 0.0
    %494 = vmatpush1.msra.mxu0 %v459
    %495 = vmatprep.subr.mxu0 0.0
    %496 = vmatpush1.msra.mxu0 %v458
    %497 = vmatprep.subr.mxu0 0.0
    %498 = vmatpush1.msra.mxu0 %v457
    %499 = vmatprep.subr.mxu0 0.0
    %500 = vmatpush1.msra.mxu0 %v456
    %501 = vmatprep.subr.mxu0 0.0
    %502 = vmatpush1.msra.mxu0 %v455
    %503 = vmatprep.subr.mxu0 0.0
    %504 = vmatpush2.msra.mxu0 0.0
    %505 = vmatprep.subr.mxu0 0.0
    %506 = vmatpush2.msra.mxu0 0.0
    %507 = vmatprep.subr.mxu0 0.0
    %508 = vmatpush2.msra.mxu0 0.0
    %509 = vmatprep.subr.mxu0 0.0
    %510 = vmatpush2.msra.mxu0 0.0
    %511 = vmatprep.subr.mxu0 0.0
    %512 = vmatpush2.msra.mxu0 0.0
    %513 = vmatprep.subr.mxu0 0.0
    %514 = vmatpush2.msra.mxu0 0.0
    %515 = vmatprep.subr.mxu0 0.0
    %516 = vmatpush2.msra.mxu0 0.0
    %517 = vmatprep.subr.mxu0 0.0
    %518 = vmatpush2.msra.mxu0 0.0
    %519 = vmatprep.subr.mxu0 0.0
    %520 = vmatpush2.msra.mxu0 0.0
    %521 = vmatprep.subr.mxu0 0.0
    %522 = vmatpush2.msra.mxu0 0.0
    %523 = vmatprep.subr.mxu0 0.0
    %524 = vmatpush2.msra.mxu0 0.0
    %525 = vmatprep.subr.mxu0 0.0
    %526 = vmatpush2.msra.mxu0 0.0
    %527 = vmatprep.subr.mxu0 0.0
    %528 = vmatpush2.msra.mxu0 0.0
    %529 = vmatprep.subr.mxu0 0.0
    %530 = vmatpush2.msra.mxu0 0.0
    %531 = vmatprep.subr.mxu0 0.0
    %532 = vmatpush2.msra.mxu0 0.0
    %533 = vmatprep.subr.mxu0 0.0
    %534 = vmatpush2.msra.mxu0 0.0
    %535 = vmatprep.mubr.f32.mxu0 0.0
    %536 = vmatmul.mubr.f32.gmra.mxu0 %v73
    %v537 = vpop.f32.mrf.mxu0
    %v538 = vadd.f32 0.0, %v537
    %v539 = vpop.f32.mrf.mxu0
    %540 = vdwg.mxu0
    %541 = vmatprep.subr.mxu0 0.0
    %542 = vmatpush1.msra.mxu0 %v453
    %543 = vmatprep.subr.mxu0 0.0
    %544 = vmatpush1.msra.mxu0 %v452
    %545 = vmatprep.subr.mxu0 0.0
    %546 = vmatpush1.msra.mxu0 %v451
    %547 = vmatprep.subr.mxu0 0.0
    %548 = vmatpush1.msra.mxu0 %v450
    %549 = vmatprep.subr.mxu0 0.0
    %550 = vmatpush1.msra.mxu0 %v449
    %551 = vmatprep.subr.mxu0 0.0
    %552 = vmatpush1.msra.mxu0 %v448
    %553 = vmatprep.subr.mxu0 0.0
    %554 = vmatpush1.msra.mxu0 %v447
    %555 = vmatprep.subr.mxu0 0.0
    %556 = vmatpush1.msra.mxu0 %v446
    %557 = vmatprep.subr.mxu0 0.0
    %558 = vmatpush1.msra.mxu0 %v445
    %559 = vmatprep.subr.mxu0 0.0
    %560 = vmatpush1.msra.mxu0 %v444
    %561 = vmatprep.subr.mxu0 0.0
    %562 = vmatpush1.msra.mxu0 %v443
    %563 = vmatprep.subr.mxu0 0.0
    %564 = vmatpush1.msra.mxu0 %v442
    %565 = vmatprep.subr.mxu0 0.0
    %566 = vmatpush1.msra.mxu0 %v441
    %567 = vmatprep.subr.mxu0 0.0
    %568 = vmatpush1.msra.mxu0 %v440
    %569 = vmatprep.subr.mxu0 0.0
    %570 = vmatpush1.msra.mxu0 %v439
    %571 = vmatprep.subr.mxu0 0.0
    %572 = vmatpush1.msra.mxu0 %v438
    %573 = vmatprep.subr.mxu0 0.0
    %574 = vmatpush2.msra.mxu0 0.0
    %575 = vmatprep.subr.mxu0 0.0
    %576 = vmatpush2.msra.mxu0 0.0
    %577 = vmatprep.subr.mxu0 0.0
    %578 = vmatpush2.msra.mxu0 0.0
    %579 = vmatprep.subr.mxu0 0.0
    %580 = vmatpush2.msra.mxu0 0.0
    %581 = vmatprep.subr.mxu0 0.0
    %582 = vmatpush2.msra.mxu0 0.0
    %583 = vmatprep.subr.mxu0 0.0
    %584 = vmatpush2.msra.mxu0 0.0
    %585 = vmatprep.subr.mxu0 0.0
    %586 = vmatpush2.msra.mxu0 0.0
    %587 = vmatprep.subr.mxu0 0.0
    %588 = vmatpush2.msra.mxu0 0.0
    %589 = vmatprep.subr.mxu0 0.0
    %590 = vmatpush2.msra.mxu0 0.0
    %591 = vmatprep.subr.mxu0 0.0
    %592 = vmatpush2.msra.mxu0 0.0
    %593 = vmatprep.subr.mxu0 0.0
    %594 = vmatpush2.msra.mxu0 0.0
    %595 = vmatprep.subr.mxu0 0.0
    %596 = vmatpush2.msra.mxu0 0.0
    %597 = vmatprep.subr.mxu0 0.0
    %598 = vmatpush2.msra.mxu0 0.0
    %599 = vmatprep.subr.mxu0 0.0
    %600 = vmatpush2.msra.mxu0 0.0
    %601 = vmatprep.subr.mxu0 0.0
    %602 = vmatpush2.msra.mxu0 0.0
    %603 = vmatprep.subr.mxu0 0.0
    %604 = vmatpush2.msra.mxu0 0.0
    %605 = vmatprep.mubr.f32.mxu0 0.0
    %606 = vmatmul.mubr.f32.gmra.mxu0 %v72
    %v607 = vpop.f32.mrf.mxu0
    %v608 = vadd.f32 %v538, %v607
    %v609 = vpop.f32.mrf.mxu0
    %610 = vdwg.mxu0
    %s611 = scalar_lea.vmem %s4, 2
    %v612 = vld [vmem:[%s611] sm:$0x1]
    %v614 = vlaneseq
    %v615 = vshrl.u32 %v614, 7
    %v616 = vsub.s32 0, %v615
    %v617 = vrot.slane %v612, %v616
    %v619 = vadd.f32 %v608, %v617
    %v620 = vmul.f32 %v253, %v436
    %v621 = vmul.f32 %v73, %v619
    %v622 = vadd.f32 %v620, %v621
    %623 = vst [vmem:[#allocation10] sm:$0xff] %v622
    // Predicated region
    $region38: #{tpu_custom_call.1} parent=1 // pred_check
      _
    $region39: #{tpu_custom_call.1} parent=1 // pred_check_branch
      %625 = sbr.rel (0) target = $region41
    $region40: #{tpu_custom_call.1} parent=1 // pred_region
      %s627 = ssub.s32 128, 128
      %628 = vsyncadd [#allocation4], %s627
      %s630 = sshll.u32 [#allocation10], 4
      %s631 = int_to_ptr.vmem [resolvable:$true] %s630
      %633 = dma.vmem_to_hbm [thread:$0]  %s631, 128, %s5, [#allocation4]
    $region41: #{tpu_custom_call.1} parent=1 // pred_fallthru
      _
    // Predicated region
    $region42: #{tpu_custom_call.1} parent=1 // pred_check
      _
    $region43: #{tpu_custom_call.1} parent=1 // pred_check_branch
      %635 = sbr.rel (0) target = $region45
    $region44: #{tpu_custom_call.1} parent=1 // pred_region
      %636 = dma.done [#allocation4], 128
    $region45: #{tpu_custom_call.1} parent=1 // pred_fallthru
      _
    %637 = vsyncpa [#allocation3], 1
    %638 = vsyncpa [#allocation6], 1
    %639 = vsyncpa [#allocation9], 1
    %640 = vsyncpa [#allocation4], 1

</llo_original>
